<compile_context>
chip_gen: v7x
topology: tpu7x:2x2x1
jax: 0.10.0
libtpu: 0.0.40
codegen_flags: <defaults>
</compile_context>

<pallas_src>
import functools

import jax
import jax.numpy as jnp
from jax import lax
from jax.experimental import pallas as pl
from jax.experimental.pallas import tpu as pltpu


def _round8(n):
    return -(-n // 8) * 8


def _slab_layout(E, H):
    """Row layout of the packed [rows, 128] weight slab (all starts 8-aligned)."""
    lay = {}
    r = 0
    for name, rows in (("wx", 2 * E),   # fused input weights, both dirs  [2E, 8H]
                       ("wh", 2 * H),   # block-diag recurrent weights    [2H, 8H]
                       ("bx", 1),       # fused gate bias                  [1, 8H]
                       ("w1", E),       # linear1 weight (lanes 0:100)     [E, 128]
                       ("b1", 1),
                       ("w2", 128),     # linear2 weight (100x30, padded)  [128,128]
                       ("b2", 1),
                       ("w3", 128),     # linear3 weight (30x2, padded)    [128,128]
                       ("b3", 1)):
        lay[name] = (r, rows)
        r += _round8(rows)
    return lay, r


def _interffe_kernel(emb2_ref, w_ref, out_ref, h_scratch, *, T, Bp, E, H, lay):
    """Whole forward pass.

    emb2_ref  : [T*Bp, 2E]  = [emb (time-major, batch padded to Bp) | emb reversed in time]
    w_ref     : [rows,128]  packed weight slab (see _slab_layout)
    out_ref   : [T*Bp, 128] lane-dense logits (real logits in lanes 0:2)
    h_scratch : [T*Bp, 2H]  VMEM scratch: [h_f | h_b] per (time, batch) row
    Gate column layout (width H each): i_f i_b f_f f_b o_f o_b g_f g_b.
    """

    def wslice(name):
        r, n = lay[name]
        return w_ref[r:r + n, :]

    emb2 = emb2_ref[...]                                           # [N, 2E]

    # ---- hoisted x-projection: all gates, both directions, bias fused ----
    xproj = (jnp.dot(emb2, wslice("wx"), preferred_element_type=jnp.float32)
             + wslice("bx"))                                       # [N, 8H]

    wh = wslice("wh")                                              # [2H, 8H]

    # ---- hoisted lane constants for the single-tanh activation ----------
    # sigmoid(x) = 0.5*tanh(0.5*x) + 0.5 on the i|f|o lanes (0:6H),
    # plain tanh on the g lanes (6H:8H).
    lane = lax.broadcasted_iota(jnp.int32, (Bp, 8 * H), 1)
    is_sig = lane < 6 * H
    act_scale = jnp.where(is_sig, 0.5, 1.0).astype(jnp.float32)    # [Bp, 8H]
    act_shift = jnp.where(is_sig, 0.5, 0.0).astype(jnp.float32)    # [Bp, 8H]

    def gate_act(z):
        t = jnp.tanh(z * act_scale)                                # ONE EUP tanh
        return t * act_scale + act_shift                           # sigmoid | tanh

    def store_h(t, h):
        # forward half at original time t; backward half de-reversed to T-1-t
        h_scratch[t * Bp:(t + 1) * Bp, 0:H] = h[:, 0:H]
        rb = (T - 1 - t) * Bp
        h_scratch[rb:rb + Bp, H:2 * H] = h[:, H:2 * H]

    # ---- fused fwd+bwd recurrence: T serial steps, t=0 peeled (h=c=0) ----
    a = gate_act(xproj[0:Bp, :])                                   # [Bp, 8H]
    c = a[:, 0:2 * H] * a[:, 6 * H:8 * H]                          # i * g
    h = a[:, 4 * H:6 * H] * jnp.tanh(c)                            # o * tanh(c)
    store_h(0, h)

    for t in range(1, T):
        z = xproj[t * Bp:(t + 1) * Bp, :] + jnp.dot(
            h, wh, preferred_element_type=jnp.float32)             # [Bp, 8H]
        a = gate_act(z)
        c = a[:, 2 * H:4 * H] * c + a[:, 0:2 * H] * a[:, 6 * H:8 * H]
        h = a[:, 4 * H:6 * H] * jnp.tanh(c)
        store_h(t, h)

    # ---- residual + MLP head (lane-padded to 128) -------------------------
    h_cat = h_scratch[...]                                         # [N, 2H] = [N, E]
    x1 = h_cat + emb2[:, 0:E]                                      # residual add
    r1, _ = lay["w1"]
    z1 = (jnp.dot(x1, w_ref[r1:r1 + E, :], preferred_element_type=jnp.float32)
          + wslice("b1"))                                          # one MXU push
    a1 = jnp.maximum(z1, 0.0)
    z2 = jnp.dot(a1, wslice("w2"), preferred_element_type=jnp.float32) + wslice("b2")
    a2 = jnp.maximum(z2, 0.0)
    z3 = jnp.dot(a2, wslice("w3"), preferred_element_type=jnp.float32) + wslice("b3")
    out_ref[...] = z3                                              # lane-dense store


def pack_params(p):
    """One-time packing of all weights into one lane-dense [rows, 128] slab."""
    f32 = jnp.float32
    E = p["we"].shape[1]
    H = E // 2
    assert 8 * H == 128, "packing assumes embedding_dim == 32 (8*H == 128 lanes)"
    lay, rows = _slab_layout(E, H)

    gate_order = (0, 1, 3, 2)          # params (i, f, g, o) -> packed (i, f, o, g)
    zE = jnp.zeros((E, H), f32)
    zH = jnp.zeros((H, H), f32)

    def fuse(w_f, w_b, zero):
        top = jnp.concatenate(sum([[w_f[g], zero] for g in gate_order], []), axis=1)
        bot = jnp.concatenate(sum([[zero, w_b[g]] for g in gate_order], []), axis=1)
        return jnp.concatenate([top, bot], axis=0)

    wx_big = fuse(p["wx_f"], p["wx_b"], zE)                         # [2E, 8H]
    wh_big = fuse(p["wh_f"], p["wh_b"], zH)                         # [2H, 8H] blk-diag
    b_big = jnp.concatenate(
        sum([[p["b_f"][g], p["b_b"][g]] for g in gate_order], []), axis=1)  # [1, 8H]

    slab = jnp.zeros((rows, 128), f32)

    def put(slab, name, arr):
        r, _ = lay[name]
        return slab.at[r:r + arr.shape[0], 0:arr.shape[1]].set(arr.astype(f32))

    slab = put(slab, "wx", wx_big)
    slab = put(slab, "wh", wh_big)
    slab = put(slab, "bx", b_big)
    slab = put(slab, "w1", p["w1"])      # [E, 100]  -> lanes 0:100
    slab = put(slab, "b1", p["b1"])
    slab = put(slab, "w2", p["w2"])      # [100, 30] -> rows +0:100, lanes 0:30
    slab = put(slab, "b2", p["b2"])
    slab = put(slab, "w3", p["w3"])      # [30, 2]
    slab = put(slab, "b3", p["b3"])
    return slab


@jax.jit
def interffe_forward(token_ids, we, slab):
    """token_ids: [T, B] int32; returns [T*B, 2] f32 logits (time-major packed)."""
    T, B = token_ids.shape
    E = we.shape[1]
    H = E // 2
    Bp = _round8(B)                      # pad batch to a full 8-row sublane tile
    N = T * Bp
    lay, _ = _slab_layout(E, H)

    # Glue: embedding gather, batch pad to Bp, time-reversed copy for bwd dir.
    emb = jnp.take(we, token_ids, axis=0).astype(jnp.float32)       # [T, B, E]
    embp = jnp.pad(emb, ((0, 0), (0, Bp - B), (0, 0)))              # [T, Bp, E]
    emb2 = jnp.concatenate(
        [embp.reshape(N, E), embp[::-1].reshape(N, E)], axis=-1)    # [N, 2E]

    kernel = functools.partial(_interffe_kernel, T=T, Bp=Bp, E=E, H=H, lay=lay)
    vmem = pl.BlockSpec(memory_space=pltpu.MemorySpace.VMEM)
    out = pl.pallas_call(
        kernel,
        out_shape=jax.ShapeDtypeStruct((N, 128), jnp.float32),      # lane-dense
        in_specs=[vmem, vmem],
        out_specs=vmem,
        scratch_shapes=[pltpu.VMEM((N, 2 * H), jnp.float32)],       # [h_f|h_b] seq
    )(emb2, slab)

    # Drop batch padding rows and the 126 padded output lanes here (XLA side).
    return out.reshape(T, Bp, 128)[:, :B, :2].reshape(T * B, 2)


def reference_forward(token_ids, p):
    """Pure-JAX reference with identical semantics (for correctness check)."""
    we = p["we"]
    T, B = token_ids.shape
    E = we.shape[1]
    H = E // 2
    emb = jnp.take(we, token_ids, axis=0).astype(jnp.float32)

    def run_dir(wx, wh, b, reverse):
        xs = emb[::-1] if reverse else emb

        def step(carry, x):
            h, c = carry
            i = jax.nn.sigmoid(x @ wx[0] + h @ wh[0] + b[0])
            f = jax.nn.sigmoid(x @ wx[1] + h @ wh[1] + b[1])
            g = jnp.tanh(x @ wx[2] + h @ wh[2] + b[2])
            o = jax.nn.sigmoid(x @ wx[3] + h @ wh[3] + b[3])
            c = f * c + i * g
            h = o * jnp.tanh(c)
            return (h, c), h

        h0 = jnp.zeros((B, H), jnp.float32)
        _, hs = lax.scan(step, (h0, h0), xs)
        return hs[::-1] if reverse else hs

    hf = run_dir(p["wx_f"], p["wh_f"], p["b_f"], reverse=False)
    hb = run_dir(p["wx_b"], p["wh_b"], p["b_b"], reverse=True)
    out = jnp.concatenate([hf, hb], axis=-1) + emb                  # residual add
    x = out.reshape(T * B, E)
    x = jax.nn.relu(x @ p["w1"] + p["b1"])
    x = jax.nn.relu(x @ p["w2"] + p["b2"])
    return x @ p["w3"] + p["b3"]


if __name__ == "__main__":
    key = jax.random.PRNGKey(0)
    vocab, E, T, B = 50, 32, 8, 2   # embedding_dim=32 -> lstm_size=16, 2*16==32
    H = E // 2
    ks = jax.random.split(key, 14)
    s = 0.1

    params = dict(
        we=jax.random.normal(ks[0], (vocab, E), jnp.float32),
        wx_f=s * jax.random.normal(ks[1], (4, E, H), jnp.float32),
        wh_f=s * jax.random.normal(ks[2], (4, H, H), jnp.float32),
        b_f=s * jax.random.normal(ks[3], (4, 1, H), jnp.float32),
        wx_b=s * jax.random.normal(ks[4], (4, E, H), jnp.float32),
        wh_b=s * jax.random.normal(ks[5], (4, H, H), jnp.float32),
        b_b=s * jax.random.normal(ks[6], (4, 1, H), jnp.float32),
        w1=s * jax.random.normal(ks[7], (E, 100), jnp.float32),
        b1=s * jax.random.normal(ks[8], (1, 100), jnp.float32),
        w2=s * jax.random.normal(ks[9], (100, 30), jnp.float32),
        b2=s * jax.random.normal(ks[10], (1, 30), jnp.float32),
        w3=s * jax.random.normal(ks[11], (30, 2), jnp.float32),
        b3=s * jax.random.normal(ks[12], (1, 2), jnp.float32),
    )
    token_ids = jax.random.randint(ks[13], (T, B), 0, vocab, dtype=jnp.int32)

    slab = jax.block_until_ready(pack_params(params))               # one-time packing
    out = jax.block_until_ready(interffe_forward(token_ids, params["we"], slab))
    ref = jax.block_until_ready(reference_forward(token_ids, params))

    assert out.shape == (T * B, 2)
    err = float(jnp.max(jnp.abs(out - ref)))
    assert err < 1e-4, f"max abs err {err}"
    print("KERNEL_OK")
</pallas_src>

<mosaic_0001>
module attributes {stable_mosaic.version = 11 : i64} {
  func.func @_interffe_kernel(%arg0: memref<64x64xf32, #tpu.memory_space<vmem>>, %arg1: memref<416x128xf32, #tpu.memory_space<vmem>>, %arg2: memref<64x128xf32, #tpu.memory_space<vmem>>, %arg3: memref<64x32xf32, #tpu.memory_space<vmem>>) attributes {dimension_semantics = [], scalar_prefetch = 0 : i64, scratch_operands = 1 : i64, tpu.core_type = #tpu.core_type<tc>} {
    %c0 = arith.constant 0 : index
    %c0_0 = arith.constant 0 : index
    %0 = vector.load %arg0[%c0, %c0_0] : memref<64x64xf32, #tpu.memory_space<vmem>>, vector<64x64xf32>
    %c0_1 = arith.constant 0 : index
    %c0_2 = arith.constant 0 : index
    %1 = vector.load %arg1[%c0_1, %c0_2] : memref<416x128xf32, #tpu.memory_space<vmem>>, vector<64x128xf32>
    %cst = arith.constant dense<0.000000e+00> : vector<64x128xf32>
    %2 = tpu.matmul %0, %1, %cst {dimension_numbers = #tpu.dot_dimension_numbers<[1], [0], [0], [1], [0, 0, 1, 1], [], []>} : vector<64x64xf32>, vector<64x128xf32>, vector<64x128xf32> -> vector<64x128xf32>
    %c96 = arith.constant 96 : index
    %c0_3 = arith.constant 0 : index
    %3 = vector.load %arg1[%c96, %c0_3] : memref<416x128xf32, #tpu.memory_space<vmem>>, vector<1x128xf32>
    %4 = vector.broadcast %3 : vector<1x128xf32> to vector<64x128xf32>
    %5 = arith.addf %2, %4 : vector<64x128xf32>
    %c64 = arith.constant 64 : index
    %c0_4 = arith.constant 0 : index
    %6 = vector.load %arg1[%c64, %c0_4] : memref<416x128xf32, #tpu.memory_space<vmem>>, vector<32x128xf32>
    %7 = tpu.iota {dimensions = array<i32: 1>} : vector<8x128xi32>
    %c96_i32 = arith.constant 96 : i32
    %8 = vector.broadcast %c96_i32 : i32 to vector<8x128xi32>
    %9 = arith.cmpi slt, %7, %8 : vector<8x128xi32>
    %cst_5 = arith.constant 5.000000e-01 : f32
    %cst_6 = arith.constant 1.000000e+00 : f32
    %10 = vector.broadcast %cst_5 : f32 to vector<8x128xf32>
    %11 = vector.broadcast %cst_6 : f32 to vector<8x128xf32>
    %12 = arith.select %9, %10, %11 : vector<8x128xi1>, vector<8x128xf32>
    %cst_7 = arith.constant 5.000000e-01 : f32
    %cst_8 = arith.constant 0.000000e+00 : f32
    %13 = vector.broadcast %cst_7 : f32 to vector<8x128xf32>
    %14 = vector.broadcast %cst_8 : f32 to vector<8x128xf32>
    %15 = arith.select %9, %13, %14 : vector<8x128xi1>, vector<8x128xf32>
    %16 = vector.extract_strided_slice %5 {offsets = [0, 0], sizes = [8, 128], strides = [1, 1]} : vector<64x128xf32> to vector<8x128xf32>
    %17 = arith.mulf %16, %12 : vector<8x128xf32>
    %18 = math.tanh %17 : vector<8x128xf32>
    %19 = arith.mulf %18, %12 : vector<8x128xf32>
    %20 = arith.addf %19, %15 : vector<8x128xf32>
    %21 = vector.extract_strided_slice %20 {offsets = [0, 0], sizes = [8, 32], strides = [1, 1]} : vector<8x128xf32> to vector<8x32xf32>
    %22 = vector.extract_strided_slice %20 {offsets = [0, 96], sizes = [8, 32], strides = [1, 1]} : vector<8x128xf32> to vector<8x32xf32>
    %23 = arith.mulf %21, %22 : vector<8x32xf32>
    %24 = vector.extract_strided_slice %20 {offsets = [0, 64], sizes = [8, 32], strides = [1, 1]} : vector<8x128xf32> to vector<8x32xf32>
    %25 = math.tanh %23 : vector<8x32xf32>
    %26 = arith.mulf %24, %25 : vector<8x32xf32>
    %27 = vector.extract_strided_slice %26 {offsets = [0, 0], sizes = [8, 16], strides = [1, 1]} : vector<8x32xf32> to vector<8x16xf32>
    %c0_9 = arith.constant 0 : index
    %c0_10 = arith.constant 0 : index
    %28 = vector.load %arg3[%c0_9, %c0_10] : memref<64x32xf32, #tpu.memory_space<vmem>>, vector<8x16xf32>
    tpu.vector_store %arg3[%c0_9, %c0_10], %27 {strides = array<i32>} : memref<64x32xf32, #tpu.memory_space<vmem>>, vector<8x16xf32>,
    %29 = vector.extract_strided_slice %26 {offsets = [0, 16], sizes = [8, 16], strides = [1, 1]} : vector<8x32xf32> to vector<8x16xf32>
    %c56 = arith.constant 56 : index
    %c16 = arith.constant 16 : index
    %30 = vector.load %arg3[%c56, %c16] : memref<64x32xf32, #tpu.memory_space<vmem>>, vector<8x16xf32>
    tpu.vector_store %arg3[%c56, %c16], %29 {strides = array<i32>} : memref<64x32xf32, #tpu.memory_space<vmem>>, vector<8x16xf32>,
    %31 = vector.extract_strided_slice %5 {offsets = [8, 0], sizes = [8, 128], strides = [1, 1]} : vector<64x128xf32> to vector<8x128xf32>
    %cst_11 = arith.constant dense<0.000000e+00> : vector<8x128xf32>
    %32 = tpu.matmul %26, %6, %cst_11 {dimension_numbers = #tpu.dot_dimension_numbers<[1], [0], [0], [1], [0, 0, 1, 1], [], []>} : vector<8x32xf32>, vector<32x128xf32>, vector<8x128xf32> -> vector<8x128xf32>
    %33 = arith.addf %31, %32 : vector<8x128xf32>
    %34 = arith.mulf %33, %12 : vector<8x128xf32>
    %35 = math.tanh %34 : vector<8x128xf32>
    %36 = arith.mulf %35, %12 : vector<8x128xf32>
    %37 = arith.addf %36, %15 : vector<8x128xf32>
    %38 = vector.extract_strided_slice %37 {offsets = [0, 32], sizes = [8, 32], strides = [1, 1]} : vector<8x128xf32> to vector<8x32xf32>
    %39 = arith.mulf %38, %23 : vector<8x32xf32>
    %40 = vector.extract_strided_slice %37 {offsets = [0, 0], sizes = [8, 32], strides = [1, 1]} : vector<8x128xf32> to vector<8x32xf32>
    %41 = vector.extract_strided_slice %37 {offsets = [0, 96], sizes = [8, 32], strides = [1, 1]} : vector<8x128xf32> to vector<8x32xf32>
    %42 = arith.mulf %40, %41 : vector<8x32xf32>
    %43 = arith.addf %39, %42 : vector<8x32xf32>
    %44 = vector.extract_strided_slice %37 {offsets = [0, 64], sizes = [8, 32], strides = [1, 1]} : vector<8x128xf32> to vector<8x32xf32>
    %45 = math.tanh %43 : vector<8x32xf32>
    %46 = arith.mulf %44, %45 : vector<8x32xf32>
    %47 = vector.extract_strided_slice %46 {offsets = [0, 0], sizes = [8, 16], strides = [1, 1]} : vector<8x32xf32> to vector<8x16xf32>
    %c8 = arith.constant 8 : index
    %c0_12 = arith.constant 0 : index
    %48 = vector.load %arg3[%c8, %c0_12] : memref<64x32xf32, #tpu.memory_space<vmem>>, vector<8x16xf32>
    tpu.vector_store %arg3[%c8, %c0_12], %47 {strides = array<i32>} : memref<64x32xf32, #tpu.memory_space<vmem>>, vector<8x16xf32>,
    %49 = vector.extract_strided_slice %46 {offsets = [0, 16], sizes = [8, 16], strides = [1, 1]} : vector<8x32xf32> to vector<8x16xf32>
    %c48 = arith.constant 48 : index
    %c16_13 = arith.constant 16 : index
    %50 = vector.load %arg3[%c48, %c16_13] : memref<64x32xf32, #tpu.memory_space<vmem>>, vector<8x16xf32>
    tpu.vector_store %arg3[%c48, %c16_13], %49 {strides = array<i32>} : memref<64x32xf32, #tpu.memory_space<vmem>>, vector<8x16xf32>,
    %51 = vector.extract_strided_slice %5 {offsets = [16, 0], sizes = [8, 128], strides = [1, 1]} : vector<64x128xf32> to vector<8x128xf32>
    %cst_14 = arith.constant dense<0.000000e+00> : vector<8x128xf32>
    %52 = tpu.matmul %46, %6, %cst_14 {dimension_numbers = #tpu.dot_dimension_numbers<[1], [0], [0], [1], [0, 0, 1, 1], [], []>} : vector<8x32xf32>, vector<32x128xf32>, vector<8x128xf32> -> vector<8x128xf32>
    %53 = arith.addf %51, %52 : vector<8x128xf32>
    %54 = arith.mulf %53, %12 : vector<8x128xf32>
    %55 = math.tanh %54 : vector<8x128xf32>
    %56 = arith.mulf %55, %12 : vector<8x128xf32>
    %57 = arith.addf %56, %15 : vector<8x128xf32>
    %58 = vector.extract_strided_slice %57 {offsets = [0, 32], sizes = [8, 32], strides = [1, 1]} : vector<8x128xf32> to vector<8x32xf32>
    %59 = arith.mulf %58, %43 : vector<8x32xf32>
    %60 = vector.extract_strided_slice %57 {offsets = [0, 0], sizes = [8, 32], strides = [1, 1]} : vector<8x128xf32> to vector<8x32xf32>
    %61 = vector.extract_strided_slice %57 {offsets = [0, 96], sizes = [8, 32], strides = [1, 1]} : vector<8x128xf32> to vector<8x32xf32>
    %62 = arith.mulf %60, %61 : vector<8x32xf32>
    %63 = arith.addf %59, %62 : vector<8x32xf32>
    %64 = vector.extract_strided_slice %57 {offsets = [0, 64], sizes = [8, 32], strides = [1, 1]} : vector<8x128xf32> to vector<8x32xf32>
    %65 = math.tanh %63 : vector<8x32xf32>
    %66 = arith.mulf %64, %65 : vector<8x32xf32>
    %67 = vector.extract_strided_slice %66 {offsets = [0, 0], sizes = [8, 16], strides = [1, 1]} : vector<8x32xf32> to vector<8x16xf32>
    %c16_15 = arith.constant 16 : index
    %c0_16 = arith.constant 0 : index
    %68 = vector.load %arg3[%c16_15, %c0_16] : memref<64x32xf32, #tpu.memory_space<vmem>>, vector<8x16xf32>
    tpu.vector_store %arg3[%c16_15, %c0_16], %67 {strides = array<i32>} : memref<64x32xf32, #tpu.memory_space<vmem>>, vector<8x16xf32>,
    %69 = vector.extract_strided_slice %66 {offsets = [0, 16], sizes = [8, 16], strides = [1, 1]} : vector<8x32xf32> to vector<8x16xf32>
    %c40 = arith.constant 40 : index
    %c16_17 = arith.constant 16 : index
    %70 = vector.load %arg3[%c40, %c16_17] : memref<64x32xf32, #tpu.memory_space<vmem>>, vector<8x16xf32>
    tpu.vector_store %arg3[%c40, %c16_17], %69 {strides = array<i32>} : memref<64x32xf32, #tpu.memory_space<vmem>>, vector<8x16xf32>,
    %71 = vector.extract_strided_slice %5 {offsets = [24, 0], sizes = [8, 128], strides = [1, 1]} : vector<64x128xf32> to vector<8x128xf32>
    %cst_18 = arith.constant dense<0.000000e+00> : vector<8x128xf32>
    %72 = tpu.matmul %66, %6, %cst_18 {dimension_numbers = #tpu.dot_dimension_numbers<[1], [0], [0], [1], [0, 0, 1, 1], [], []>} : vector<8x32xf32>, vector<32x128xf32>, vector<8x128xf32> -> vector<8x128xf32>
    %73 = arith.addf %71, %72 : vector<8x128xf32>
    %74 = arith.mulf %73, %12 : vector<8x128xf32>
    %75 = math.tanh %74 : vector<8x128xf32>
    %76 = arith.mulf %75, %12 : vector<8x128xf32>
    %77 = arith.addf %76, %15 : vector<8x128xf32>
    %78 = vector.extract_strided_slice %77 {offsets = [0, 32], sizes = [8, 32], strides = [1, 1]} : vector<8x128xf32> to vector<8x32xf32>
    %79 = arith.mulf %78, %63 : vector<8x32xf32>
    %80 = vector.extract_strided_slice %77 {offsets = [0, 0], sizes = [8, 32], strides = [1, 1]} : vector<8x128xf32> to vector<8x32xf32>
    %81 = vector.extract_strided_slice %77 {offsets = [0, 96], sizes = [8, 32], strides = [1, 1]} : vector<8x128xf32> to vector<8x32xf32>
    %82 = arith.mulf %80, %81 : vector<8x32xf32>
    %83 = arith.addf %79, %82 : vector<8x32xf32>
    %84 = vector.extract_strided_slice %77 {offsets = [0, 64], sizes = [8, 32], strides = [1, 1]} : vector<8x128xf32> to vector<8x32xf32>
    %85 = math.tanh %83 : vector<8x32xf32>
    %86 = arith.mulf %84, %85 : vector<8x32xf32>
    %87 = vector.extract_strided_slice %86 {offsets = [0, 0], sizes = [8, 16], strides = [1, 1]} : vector<8x32xf32> to vector<8x16xf32>
    %c24 = arith.constant 24 : index
    %c0_19 = arith.constant 0 : index
    %88 = vector.load %arg3[%c24, %c0_19] : memref<64x32xf32, #tpu.memory_space<vmem>>, vector<8x16xf32>
    tpu.vector_store %arg3[%c24, %c0_19], %87 {strides = array<i32>} : memref<64x32xf32, #tpu.memory_space<vmem>>, vector<8x16xf32>,
    %89 = vector.extract_strided_slice %86 {offsets = [0, 16], sizes = [8, 16], strides = [1, 1]} : vector<8x32xf32> to vector<8x16xf32>
    %c32 = arith.constant 32 : index
    %c16_20 = arith.constant 16 : index
    %90 = vector.load %arg3[%c32, %c16_20] : memref<64x32xf32, #tpu.memory_space<vmem>>, vector<8x16xf32>
    tpu.vector_store %arg3[%c32, %c16_20], %89 {strides = array<i32>} : memref<64x32xf32, #tpu.memory_space<vmem>>, vector<8x16xf32>,
    %91 = vector.extract_strided_slice %5 {offsets = [32, 0], sizes = [8, 128], strides = [1, 1]} : vector<64x128xf32> to vector<8x128xf32>
    %cst_21 = arith.constant dense<0.000000e+00> : vector<8x128xf32>
    %92 = tpu.matmul %86, %6, %cst_21 {dimension_numbers = #tpu.dot_dimension_numbers<[1], [0], [0], [1], [0, 0, 1, 1], [], []>} : vector<8x32xf32>, vector<32x128xf32>, vector<8x128xf32> -> vector<8x128xf32>
    %93 = arith.addf %91, %92 : vector<8x128xf32>
    %94 = arith.mulf %93, %12 : vector<8x128xf32>
    %95 = math.tanh %94 : vector<8x128xf32>
    %96 = arith.mulf %95, %12 : vector<8x128xf32>
    %97 = arith.addf %96, %15 : vector<8x128xf32>
    %98 = vector.extract_strided_slice %97 {offsets = [0, 32], sizes = [8, 32], strides = [1, 1]} : vector<8x128xf32> to vector<8x32xf32>
    %99 = arith.mulf %98, %83 : vector<8x32xf32>
    %100 = vector.extract_strided_slice %97 {offsets = [0, 0], sizes = [8, 32], strides = [1, 1]} : vector<8x128xf32> to vector<8x32xf32>
    %101 = vector.extract_strided_slice %97 {offsets = [0, 96], sizes = [8, 32], strides = [1, 1]} : vector<8x128xf32> to vector<8x32xf32>
    %102 = arith.mulf %100, %101 : vector<8x32xf32>
    %103 = arith.addf %99, %102 : vector<8x32xf32>
    %104 = vector.extract_strided_slice %97 {offsets = [0, 64], sizes = [8, 32], strides = [1, 1]} : vector<8x128xf32> to vector<8x32xf32>
    %105 = math.tanh %103 : vector<8x32xf32>
    %106 = arith.mulf %104, %105 : vector<8x32xf32>
    %107 = vector.extract_strided_slice %106 {offsets = [0, 0], sizes = [8, 16], strides = [1, 1]} : vector<8x32xf32> to vector<8x16xf32>
    %c32_22 = arith.constant 32 : index
    %c0_23 = arith.constant 0 : index
    %108 = vector.load %arg3[%c32_22, %c0_23] : memref<64x32xf32, #tpu.memory_space<vmem>>, vector<8x16xf32>
    tpu.vector_store %arg3[%c32_22, %c0_23], %107 {strides = array<i32>} : memref<64x32xf32, #tpu.memory_space<vmem>>, vector<8x16xf32>,
    %109 = vector.extract_strided_slice %106 {offsets = [0, 16], sizes = [8, 16], strides = [1, 1]} : vector<8x32xf32> to vector<8x16xf32>
    %c24_24 = arith.constant 24 : index
    %c16_25 = arith.constant 16 : index
    %110 = vector.load %arg3[%c24_24, %c16_25] : memref<64x32xf32, #tpu.memory_space<vmem>>, vector<8x16xf32>
    tpu.vector_store %arg3[%c24_24, %c16_25], %109 {strides = array<i32>} : memref<64x32xf32, #tpu.memory_space<vmem>>, vector<8x16xf32>,
    %111 = vector.extract_strided_slice %5 {offsets = [40, 0], sizes = [8, 128], strides = [1, 1]} : vector<64x128xf32> to vector<8x128xf32>
    %cst_26 = arith.constant dense<0.000000e+00> : vector<8x128xf32>
    %112 = tpu.matmul %106, %6, %cst_26 {dimension_numbers = #tpu.dot_dimension_numbers<[1], [0], [0], [1], [0, 0, 1, 1], [], []>} : vector<8x32xf32>, vector<32x128xf32>, vector<8x128xf32> -> vector<8x128xf32>
    %113 = arith.addf %111, %112 : vector<8x128xf32>
    %114 = arith.mulf %113, %12 : vector<8x128xf32>
    %115 = math.tanh %114 : vector<8x128xf32>
    %116 = arith.mulf %115, %12 : vector<8x128xf32>
    %117 = arith.addf %116, %15 : vector<8x128xf32>
    %118 = vector.extract_strided_slice %117 {offsets = [0, 32], sizes = [8, 32], strides = [1, 1]} : vector<8x128xf32> to vector<8x32xf32>
    %119 = arith.mulf %118, %103 : vector<8x32xf32>
    %120 = vector.extract_strided_slice %117 {offsets = [0, 0], sizes = [8, 32], strides = [1, 1]} : vector<8x128xf32> to vector<8x32xf32>
    %121 = vector.extract_strided_slice %117 {offsets = [0, 96], sizes = [8, 32], strides = [1, 1]} : vector<8x128xf32> to vector<8x32xf32>
    %122 = arith.mulf %120, %121 : vector<8x32xf32>
    %123 = arith.addf %119, %122 : vector<8x32xf32>
    %124 = vector.extract_strided_slice %117 {offsets = [0, 64], sizes = [8, 32], strides = [1, 1]} : vector<8x128xf32> to vector<8x32xf32>
    %125 = math.tanh %123 : vector<8x32xf32>
    %126 = arith.mulf %124, %125 : vector<8x32xf32>
    %127 = vector.extract_strided_slice %126 {offsets = [0, 0], sizes = [8, 16], strides = [1, 1]} : vector<8x32xf32> to vector<8x16xf32>
    %c40_27 = arith.constant 40 : index
    %c0_28 = arith.constant 0 : index
    %128 = vector.load %arg3[%c40_27, %c0_28] : memref<64x32xf32, #tpu.memory_space<vmem>>, vector<8x16xf32>
    tpu.vector_store %arg3[%c40_27, %c0_28], %127 {strides = array<i32>} : memref<64x32xf32, #tpu.memory_space<vmem>>, vector<8x16xf32>,
    %129 = vector.extract_strided_slice %126 {offsets = [0, 16], sizes = [8, 16], strides = [1, 1]} : vector<8x32xf32> to vector<8x16xf32>
    %c16_29 = arith.constant 16 : index
    %c16_30 = arith.constant 16 : index
    %130 = vector.load %arg3[%c16_29, %c16_30] : memref<64x32xf32, #tpu.memory_space<vmem>>, vector<8x16xf32>
    tpu.vector_store %arg3[%c16_29, %c16_30], %129 {strides = array<i32>} : memref<64x32xf32, #tpu.memory_space<vmem>>, vector<8x16xf32>,
    %131 = vector.extract_strided_slice %5 {offsets = [48, 0], sizes = [8, 128], strides = [1, 1]} : vector<64x128xf32> to vector<8x128xf32>
    %cst_31 = arith.constant dense<0.000000e+00> : vector<8x128xf32>
    %132 = tpu.matmul %126, %6, %cst_31 {dimension_numbers = #tpu.dot_dimension_numbers<[1], [0], [0], [1], [0, 0, 1, 1], [], []>} : vector<8x32xf32>, vector<32x128xf32>, vector<8x128xf32> -> vector<8x128xf32>
    %133 = arith.addf %131, %132 : vector<8x128xf32>
    %134 = arith.mulf %133, %12 : vector<8x128xf32>
    %135 = math.tanh %134 : vector<8x128xf32>
    %136 = arith.mulf %135, %12 : vector<8x128xf32>
    %137 = arith.addf %136, %15 : vector<8x128xf32>
    %138 = vector.extract_strided_slice %137 {offsets = [0, 32], sizes = [8, 32], strides = [1, 1]} : vector<8x128xf32> to vector<8x32xf32>
    %139 = arith.mulf %138, %123 : vector<8x32xf32>
    %140 = vector.extract_strided_slice %137 {offsets = [0, 0], sizes = [8, 32], strides = [1, 1]} : vector<8x128xf32> to vector<8x32xf32>
    %141 = vector.extract_strided_slice %137 {offsets = [0, 96], sizes = [8, 32], strides = [1, 1]} : vector<8x128xf32> to vector<8x32xf32>
    %142 = arith.mulf %140, %141 : vector<8x32xf32>
    %143 = arith.addf %139, %142 : vector<8x32xf32>
    %144 = vector.extract_strided_slice %137 {offsets = [0, 64], sizes = [8, 32], strides = [1, 1]} : vector<8x128xf32> to vector<8x32xf32>
    %145 = math.tanh %143 : vector<8x32xf32>
    %146 = arith.mulf %144, %145 : vector<8x32xf32>
    %147 = vector.extract_strided_slice %146 {offsets = [0, 0], sizes = [8, 16], strides = [1, 1]} : vector<8x32xf32> to vector<8x16xf32>
    %c48_32 = arith.constant 48 : index
    %c0_33 = arith.constant 0 : index
    %148 = vector.load %arg3[%c48_32, %c0_33] : memref<64x32xf32, #tpu.memory_space<vmem>>, vector<8x16xf32>
    tpu.vector_store %arg3[%c48_32, %c0_33], %147 {strides = array<i32>} : memref<64x32xf32, #tpu.memory_space<vmem>>, vector<8x16xf32>,
    %149 = vector.extract_strided_slice %146 {offsets = [0, 16], sizes = [8, 16], strides = [1, 1]} : vector<8x32xf32> to vector<8x16xf32>
    %c8_34 = arith.constant 8 : index
    %c16_35 = arith.constant 16 : index
    %150 = vector.load %arg3[%c8_34, %c16_35] : memref<64x32xf32, #tpu.memory_space<vmem>>, vector<8x16xf32>
    tpu.vector_store %arg3[%c8_34, %c16_35], %149 {strides = array<i32>} : memref<64x32xf32, #tpu.memory_space<vmem>>, vector<8x16xf32>,
    %151 = vector.extract_strided_slice %5 {offsets = [56, 0], sizes = [8, 128], strides = [1, 1]} : vector<64x128xf32> to vector<8x128xf32>
    %cst_36 = arith.constant dense<0.000000e+00> : vector<8x128xf32>
    %152 = tpu.matmul %146, %6, %cst_36 {dimension_numbers = #tpu.dot_dimension_numbers<[1], [0], [0], [1], [0, 0, 1, 1], [], []>} : vector<8x32xf32>, vector<32x128xf32>, vector<8x128xf32> -> vector<8x128xf32>
    %153 = arith.addf %151, %152 : vector<8x128xf32>
    %154 = arith.mulf %153, %12 : vector<8x128xf32>
    %155 = math.tanh %154 : vector<8x128xf32>
    %156 = arith.mulf %155, %12 : vector<8x128xf32>
    %157 = arith.addf %156, %15 : vector<8x128xf32>
    %158 = vector.extract_strided_slice %157 {offsets = [0, 32], sizes = [8, 32], strides = [1, 1]} : vector<8x128xf32> to vector<8x32xf32>
    %159 = arith.mulf %158, %143 : vector<8x32xf32>
    %160 = vector.extract_strided_slice %157 {offsets = [0, 0], sizes = [8, 32], strides = [1, 1]} : vector<8x128xf32> to vector<8x32xf32>
    %161 = vector.extract_strided_slice %157 {offsets = [0, 96], sizes = [8, 32], strides = [1, 1]} : vector<8x128xf32> to vector<8x32xf32>
    %162 = arith.mulf %160, %161 : vector<8x32xf32>
    %163 = arith.addf %159, %162 : vector<8x32xf32>
    %164 = vector.extract_strided_slice %157 {offsets = [0, 64], sizes = [8, 32], strides = [1, 1]} : vector<8x128xf32> to vector<8x32xf32>
    %165 = math.tanh %163 : vector<8x32xf32>
    %166 = arith.mulf %164, %165 : vector<8x32xf32>
    %167 = vector.extract_strided_slice %166 {offsets = [0, 0], sizes = [8, 16], strides = [1, 1]} : vector<8x32xf32> to vector<8x16xf32>
    %c56_37 = arith.constant 56 : index
    %c0_38 = arith.constant 0 : index
    %168 = vector.load %arg3[%c56_37, %c0_38] : memref<64x32xf32, #tpu.memory_space<vmem>>, vector<8x16xf32>
    tpu.vector_store %arg3[%c56_37, %c0_38], %167 {strides = array<i32>} : memref<64x32xf32, #tpu.memory_space<vmem>>, vector<8x16xf32>,
    %169 = vector.extract_strided_slice %166 {offsets = [0, 16], sizes = [8, 16], strides = [1, 1]} : vector<8x32xf32> to vector<8x16xf32>
    %c0_39 = arith.constant 0 : index
    %c16_40 = arith.constant 16 : index
    %170 = vector.load %arg3[%c0_39, %c16_40] : memref<64x32xf32, #tpu.memory_space<vmem>>, vector<8x16xf32>
    tpu.vector_store %arg3[%c0_39, %c16_40], %169 {strides = array<i32>} : memref<64x32xf32, #tpu.memory_space<vmem>>, vector<8x16xf32>,
    %c0_41 = arith.constant 0 : index
    %c0_42 = arith.constant 0 : index
    %171 = vector.load %arg3[%c0_41, %c0_42] : memref<64x32xf32, #tpu.memory_space<vmem>>, vector<64x32xf32>
    %172 = vector.extract_strided_slice %0 {offsets = [0, 0], sizes = [64, 32], strides = [1, 1]} : vector<64x64xf32> to vector<64x32xf32>
    %173 = arith.addf %171, %172 : vector<64x32xf32>
    %c104 = arith.constant 104 : index
    %c0_43 = arith.constant 0 : index
    %174 = vector.load %arg1[%c104, %c0_43] : memref<416x128xf32, #tpu.memory_space<vmem>>, vector<32x128xf32>
    %cst_44 = arith.constant dense<0.000000e+00> : vector<64x128xf32>
    %175 = tpu.matmul %173, %174, %cst_44 {dimension_numbers = #tpu.dot_dimension_numbers<[1], [0], [0], [1], [0, 0, 1, 1], [], []>} : vector<64x32xf32>, vector<32x128xf32>, vector<64x128xf32> -> vector<64x128xf32>
    %c136 = arith.constant 136 : index
    %c0_45 = arith.constant 0 : index
    %176 = vector.load %arg1[%c136, %c0_45] : memref<416x128xf32, #tpu.memory_space<vmem>>, vector<1x128xf32>
    %177 = vector.broadcast %176 : vector<1x128xf32> to vector<64x128xf32>
    %178 = arith.addf %175, %177 : vector<64x128xf32>
    %cst_46 = arith.constant 0.000000e+00 : f32
    %179 = vector.broadcast %cst_46 : f32 to vector<64x128xf32>
    %180 = arith.maximumf %178, %179 : vector<64x128xf32>
    %c144 = arith.constant 144 : index
    %c0_47 = arith.constant 0 : index
    %181 = vector.load %arg1[%c144, %c0_47] : memref<416x128xf32, #tpu.memory_space<vmem>>, vector<128x128xf32>
    %cst_48 = arith.constant dense<0.000000e+00> : vector<64x128xf32>
    %182 = tpu.matmul %180, %181, %cst_48 {dimension_numbers = #tpu.dot_dimension_numbers<[1], [0], [0], [1], [0, 0, 1, 1], [], []>} : vector<64x128xf32>, vector<128x128xf32>, vector<64x128xf32> -> vector<64x128xf32>
    %c272 = arith.constant 272 : index
    %c0_49 = arith.constant 0 : index
    %183 = vector.load %arg1[%c272, %c0_49] : memref<416x128xf32, #tpu.memory_space<vmem>>, vector<1x128xf32>
    %184 = vector.broadcast %183 : vector<1x128xf32> to vector<64x128xf32>
    %185 = arith.addf %182, %184 : vector<64x128xf32>
    %cst_50 = arith.constant 0.000000e+00 : f32
    %186 = vector.broadcast %cst_50 : f32 to vector<64x128xf32>
    %187 = arith.maximumf %185, %186 : vector<64x128xf32>
    %c280 = arith.constant 280 : index
    %c0_51 = arith.constant 0 : index
    %188 = vector.load %arg1[%c280, %c0_51] : memref<416x128xf32, #tpu.memory_space<vmem>>, vector<128x128xf32>
    %cst_52 = arith.constant dense<0.000000e+00> : vector<64x128xf32>
    %189 = tpu.matmul %187, %188, %cst_52 {dimension_numbers = #tpu.dot_dimension_numbers<[1], [0], [0], [1], [0, 0, 1, 1], [], []>} : vector<64x128xf32>, vector<128x128xf32>, vector<64x128xf32> -> vector<64x128xf32>
    %c408 = arith.constant 408 : index
    %c0_53 = arith.constant 0 : index
    %190 = vector.load %arg1[%c408, %c0_53] : memref<416x128xf32, #tpu.memory_space<vmem>>, vector<1x128xf32>
    %191 = vector.broadcast %190 : vector<1x128xf32> to vector<64x128xf32>
    %192 = arith.addf %189, %191 : vector<64x128xf32>
    %c0_54 = arith.constant 0 : index
    %c0_55 = arith.constant 0 : index
    %193 = vector.load %arg2[%c0_54, %c0_55] : memref<64x128xf32, #tpu.memory_space<vmem>>, vector<64x128xf32>
    tpu.vector_store %arg2[%c0_54, %c0_55], %192 {strides = array<i32>} : memref<64x128xf32, #tpu.memory_space<vmem>>, vector<64x128xf32>,
    return
  }
}

</mosaic_0001>

<llo_original>
// kernel: interffe_forward.1
$region0: #{interffe_forward.1}
  #allocation0 [shape = 'u32[]', space=smem, size = 0x4, offset = 0x4, fixed_abs, tag = 'smem constant byte address 0x4 - core index']
  #allocation1 [shape = 'u32[144,128]{1,0:T(1,128)}', space=vmem, size = 0x12000, scoped, tag = 'internal scratch']
  #allocation2 [shape = 'f32[64,32]{1,0:T(8,128)}', space=vmem, size = 0x8000, scoped, tag = 'scratch operand']
  %s0 = inlined_call_operand.vmem [shape: f32[64,64], index: 0, kind: input, shape index: {}]
  %s1 = inlined_call_operand.vmem [shape: f32[416,128], index: 1, kind: input, shape index: {}]
  %s2 = inlined_call_operand.vmem [shape: f32[64,128], index: 2, kind: output, shape index: {}]
  %s3 = sld [smem:[#allocation0]]
  $region18: #{interffe_forward.1} parent=0
    _
  %s5 = ssub.s32 1, %s3
  %s6 = scalar_select 0, %s5, %s3
  // Predicated region
  $region2: #{interffe_forward.1} parent=0 // pred_check
    _
  $region3: #{interffe_forward.1} parent=0 // pred_check_branch
    %8 = sbr.rel (0) target = $region5
  $region4: #{interffe_forward.1} parent=0 // pred_region
    _
  $region5: #{interffe_forward.1} parent=0 // pred_fallthru
    _
  // Predicated region
  $region6: #{interffe_forward.1} parent=0 // pred_check
    _
  $region7: #{interffe_forward.1} parent=0 // pred_check_branch
    %10 = sbr.rel (0) target = $region9
  $region8: #{interffe_forward.1} parent=0 // pred_region
    _
  $region9: #{interffe_forward.1} parent=0 // pred_fallthru
    _
  %v11 = vld [vmem:[%s0] sm:$0xff]
  %v12 = vld [vmem:[%s0 + $0x8] sm:$0xff]
  %v13 = vld [vmem:[%s0 + $0x10] sm:$0xff]
  %v14 = vld [vmem:[%s0 + $0x18] sm:$0xff]
  %v15 = vld [vmem:[%s0 + $0x20] sm:$0xff]
  %v16 = vld [vmem:[%s0 + $0x28] sm:$0xff]
  %v17 = vld [vmem:[%s0 + $0x30] sm:$0xff]
  %v18 = vld [vmem:[%s0 + $0x38] sm:$0xff]
  %v19 = vld [vmem:[%s1] sm:$0xff]
  %v20 = vld [vmem:[%s1 + $0x8] sm:$0xff]
  %v21 = vld [vmem:[%s1 + $0x10] sm:$0xff]
  %v22 = vld [vmem:[%s1 + $0x18] sm:$0xff]
  %v23 = vld [vmem:[%s1 + $0x20] sm:$0xff]
  %v24 = vld [vmem:[%s1 + $0x28] sm:$0xff]
  %v25 = vld [vmem:[%s1 + $0x30] sm:$0xff]
  %v26 = vld [vmem:[%s1 + $0x38] sm:$0xff]
  %v27 = vld [vmem:[%s1 + $0x60] sm:$0x1]
  %v28 = vlaneseq
  %v29 = vshrl.u32 %v28, 7
  %v30 = vsub.s32 0, %v29
  %v31 = vrot.slane %v27, %v30
  %vm32 = vcmask 523264
  %v34 = vsel %vm32, %v11, 0
  %v37 = vsel %vm32, %v12, 0
  %v40 = vsel %vm32, %v13, 0
  %v43 = vsel %vm32, %v14, 0
  %v46 = vsel %vm32, %v15, 0
  %v49 = vsel %vm32, %v16, 0
  %v52 = vsel %vm32, %v17, 0
  %v55 = vsel %vm32, %v18, 0
  %57 = vmatprep.subr.mxu0 0.0
  %58 = vmatpush1.msra.mxu0 %v19
  %59 = vmatprep.subr.mxu0 0.0
  %60 = vmatpush1.msra.mxu0 %v20
  %61 = vmatprep.subr.mxu0 0.0
  %62 = vmatpush1.msra.mxu0 %v21
  %63 = vmatprep.subr.mxu0 0.0
  %64 = vmatpush1.msra.mxu0 %v22
  %65 = vmatprep.subr.mxu0 0.0
  %66 = vmatpush1.msra.mxu0 %v23
  %67 = vmatprep.subr.mxu0 0.0
  %68 = vmatpush1.msra.mxu0 %v24
  %69 = vmatprep.subr.mxu0 0.0
  %70 = vmatpush1.msra.mxu0 %v25
  %71 = vmatprep.subr.mxu0 0.0
  %72 = vmatpush1.msra.mxu0 %v26
  %73 = vmatprep.subr.mxu0 0.0
  %74 = vmatpush1.msra.mxu0 0.0
  %75 = vmatprep.subr.mxu0 0.0
  %76 = vmatpush1.msra.mxu0 0.0
  %77 = vmatprep.subr.mxu0 0.0
  %78 = vmatpush1.msra.mxu0 0.0
  %79 = vmatprep.subr.mxu0 0.0
  %80 = vmatpush1.msra.mxu0 0.0
  %81 = vmatprep.subr.mxu0 0.0
  %82 = vmatpush1.msra.mxu0 0.0
  %83 = vmatprep.subr.mxu0 0.0
  %84 = vmatpush1.msra.mxu0 0.0
  %85 = vmatprep.subr.mxu0 0.0
  %86 = vmatpush1.msra.mxu0 0.0
  %87 = vmatprep.subr.mxu0 0.0
  %88 = vmatpush1.msra.mxu0 0.0
  %89 = vmatprep.subr.mxu0 0.0
  %90 = vmatpush1.msra.mxu0 0.0
  %91 = vmatprep.subr.mxu0 0.0
  %92 = vmatpush1.msra.mxu0 0.0
  %93 = vmatprep.subr.mxu0 0.0
  %94 = vmatpush1.msra.mxu0 0.0
  %95 = vmatprep.subr.mxu0 0.0
  %96 = vmatpush1.msra.mxu0 0.0
  %97 = vmatprep.subr.mxu0 0.0
  %98 = vmatpush1.msra.mxu0 0.0
  %99 = vmatprep.subr.mxu0 0.0
  %100 = vmatpush1.msra.mxu0 0.0
  %101 = vmatprep.subr.mxu0 0.0
  %102 = vmatpush1.msra.mxu0 0.0
  %103 = vmatprep.subr.mxu0 0.0
  %104 = vmatpush1.msra.mxu0 0.0
  %105 = vmatprep.subr.mxu0 0.0
  %106 = vmatpush1.msra.mxu0 0.0
  %107 = vmatprep.subr.mxu0 0.0
  %108 = vmatpush1.msra.mxu0 0.0
  %109 = vmatprep.subr.mxu0 0.0
  %110 = vmatpush1.msra.mxu0 0.0
  %111 = vmatprep.subr.mxu0 0.0
  %112 = vmatpush1.msra.mxu0 0.0
  %113 = vmatprep.subr.mxu0 0.0
  %114 = vmatpush1.msra.mxu0 0.0
  %115 = vmatprep.subr.mxu0 0.0
  %116 = vmatpush1.msra.mxu0 0.0
  %117 = vmatprep.subr.mxu0 0.0
  %118 = vmatpush1.msra.mxu0 0.0
  %119 = vmatprep.subr.mxu0 0.0
  %120 = vmatpush1.msra.mxu0 0.0
  %121 = vmatprep.mubr.f32.mxu0 0.0
  %122 = vmatmul.mubr.f32.gmra.mrb[0].mxu0 %v34
  %v123 = vpop.f32.mrb[0].mxu0
  %v124 = vadd.f32 %v31, %v123
  %v125 = vpop.f32.mrb[0].mxu0
  %126 = vmatprep.mubr.f32.mxu0 0.0
  %127 = vmatmul.mubr.f32.gmra.mrb[0].mxu0 %v37
  %v128 = vpop.f32.mrb[0].mxu0
  %v129 = vadd.f32 %v31, %v128
  %v130 = vpop.f32.mrb[0].mxu0
  %131 = vmatprep.mubr.f32.mxu0 0.0
  %132 = vmatmul.mubr.f32.gmra.mrb[0].mxu0 %v40
  %v133 = vpop.f32.mrb[0].mxu0
  %v134 = vadd.f32 %v31, %v133
  %v135 = vpop.f32.mrb[0].mxu0
  %136 = vmatprep.mubr.f32.mxu0 0.0
  %137 = vmatmul.mubr.f32.gmra.mrb[0].mxu0 %v43
  %v138 = vpop.f32.mrb[0].mxu0
  %v139 = vadd.f32 %v31, %v138
  %v140 = vpop.f32.mrb[0].mxu0
  %141 = vmatprep.mubr.f32.mxu0 0.0
  %142 = vmatmul.mubr.f32.gmra.mrb[0].mxu0 %v46
  %v143 = vpop.f32.mrb[0].mxu0
  %v144 = vadd.f32 %v31, %v143
  %v145 = vpop.f32.mrb[0].mxu0
  %146 = vmatprep.mubr.f32.mxu0 0.0
  %147 = vmatmul.mubr.f32.gmra.mrb[0].mxu0 %v49
  %v148 = vpop.f32.mrb[0].mxu0
  %v149 = vadd.f32 %v31, %v148
  %v150 = vpop.f32.mrb[0].mxu0
  %151 = vmatprep.mubr.f32.mxu0 0.0
  %152 = vmatmul.mubr.f32.gmra.mrb[0].mxu0 %v52
  %v153 = vpop.f32.mrb[0].mxu0
  %v154 = vadd.f32 %v31, %v153
  %v155 = vpop.f32.mrb[0].mxu0
  %156 = vmatprep.mubr.f32.mxu0 0.0
  %157 = vmatmul.mubr.f32.gmra.mrb[0].mxu0 %v55
  %v158 = vpop.f32.mrb[0].mxu0
  %v159 = vadd.f32 %v31, %v158
  %v160 = vpop.f32.mrb[0].mxu0
  %161 = vdwg.mxu0
  %v162 = vld [vmem:[%s1 + $0x40] sm:$0xff]
  %v163 = vld [vmem:[%s1 + $0x48] sm:$0xff]
  %v164 = vld [vmem:[%s1 + $0x50] sm:$0xff]
  %v165 = vld [vmem:[%s1 + $0x58] sm:$0xff]
  %v166 = vlaneseq
  %v167 = vand.u32 %v166, 127
  %vm168 = vcmp.lt.s32.totalorder %v167, 96
  %v169 = vsel %vm168, 0.5, 1.0
  %v170 = vsel %vm168, 0.5, 0.0
  %v171 = vmul.f32 %v124, %v169
  %v172 = vtanh.pop %v171
  %v173 = vmul.f32 %v172, %v169
  %v174 = vadd.f32 %v173, %v170
  %176 = vrot.lane.b32.xlu0 %v174, 32
  %v177 = vpop.permute.xlu0 %176
  %v179 = vmul.f32 %v174, %v177
  %v180 = vtanh.pop %v179
  %182 = vrot.lane.b32.xlu0 %v180, 64
  %v183 = vpop.permute.xlu0 %182
  %v185 = vmul.f32 %v174, %v183
  %187 = vrot.lane.b32.xlu0 %v185, 64
  %v188 = vpop.permute.xlu0 %187
  %vm190 = vcmask 130048
  %191 = vst.msk [vmem:[#allocation2] sm:$0xff] %vm190, %v188
  %vm192 = vcmask 261248
  %193 = vst.msk [vmem:[#allocation2 + $0x38] sm:$0xff] %vm192, %v188
  %vm194 = vcmask 261120
  %v195 = vsel %vm194, %v188, 0
  %197 = vmatprep.subr.mxu0 0.0
  %198 = vmatpush1.msra.mxu0 %v162
  %199 = vmatprep.subr.mxu0 0.0
  %200 = vmatpush1.msra.mxu0 %v163
  %201 = vmatprep.subr.mxu0 0.0
  %202 = vmatpush1.msra.mxu0 %v164
  %203 = vmatprep.subr.mxu0 0.0
  %204 = vmatpush1.msra.mxu0 %v165
  %205 = vmatprep.subr.mxu0 0.0
  %206 = vmatpush1.msra.mxu0 0.0
  %207 = vmatprep.subr.mxu0 0.0
  %208 = vmatpush1.msra.mxu0 0.0
  %209 = vmatprep.subr.mxu0 0.0
  %210 = vmatpush1.msra.mxu0 0.0
  %211 = vmatprep.subr.mxu0 0.0
  %212 = vmatpush1.msra.mxu0 0.0
  %213 = vmatprep.subr.mxu0 0.0
  %214 = vmatpush1.msra.mxu0 0.0
  %215 = vmatprep.subr.mxu0 0.0
  %216 = vmatpush1.msra.mxu0 0.0
  %217 = vmatprep.subr.mxu0 0.0
  %218 = vmatpush1.msra.mxu0 0.0
  %219 = vmatprep.subr.mxu0 0.0
  %220 = vmatpush1.msra.mxu0 0.0
  %221 = vmatprep.subr.mxu0 0.0
  %222 = vmatpush1.msra.mxu0 0.0
  %223 = vmatprep.subr.mxu0 0.0
  %224 = vmatpush1.msra.mxu0 0.0
  %225 = vmatprep.subr.mxu0 0.0
  %226 = vmatpush1.msra.mxu0 0.0
  %227 = vmatprep.subr.mxu0 0.0
  %228 = vmatpush1.msra.mxu0 0.0
  %229 = vmatprep.subr.mxu0 0.0
  %230 = vmatpush1.msra.mxu0 0.0
  %231 = vmatprep.subr.mxu0 0.0
  %232 = vmatpush1.msra.mxu0 0.0
  %233 = vmatprep.subr.mxu0 0.0
  %234 = vmatpush1.msra.mxu0 0.0
  %235 = vmatprep.subr.mxu0 0.0
  %236 = vmatpush1.msra.mxu0 0.0
  %237 = vmatprep.subr.mxu0 0.0
  %238 = vmatpush1.msra.mxu0 0.0
  %239 = vmatprep.subr.mxu0 0.0
  %240 = vmatpush1.msra.mxu0 0.0
  %241 = vmatprep.subr.mxu0 0.0
  %242 = vmatpush1.msra.mxu0 0.0
  %243 = vmatprep.subr.mxu0 0.0
  %244 = vmatpush1.msra.mxu0 0.0
  %245 = vmatprep.subr.mxu0 0.0
  %246 = vmatpush1.msra.mxu0 0.0
  %247 = vmatprep.subr.mxu0 0.0
  %248 = vmatpush1.msra.mxu0 0.0
  %249 = vmatprep.subr.mxu0 0.0
  %250 = vmatpush1.msra.mxu0 0.0
  %251 = vmatprep.subr.mxu0 0.0
  %252 = vmatpush1.msra.mxu0 0.0
  %253 = vmatprep.subr.mxu0 0.0
  %254 = vmatpush1.msra.mxu0 0.0
  %255 = vmatprep.subr.mxu0 0.0
  %256 = vmatpush1.msra.mxu0 0.0
  %257 = vmatprep.subr.mxu0 0.0
  %258 = vmatpush1.msra.mxu0 0.0
  %259 = vmatprep.subr.mxu0 0.0
  %260 = vmatpush1.msra.mxu0 0.0
  %261 = vmatprep.mubr.f32.mxu0 0.0
  %262 = vmatmul.mubr.f32.gmra.mrb[0].mxu0 %v195
  %v263 = vpop.f32.mrb[0].mxu0
  %v264 = vadd.f32 0.0, %v263
  %v265 = vpop.f32.mrb[0].mxu0
  %266 = vdwg.mxu0
  %v267 = vadd.f32 %v129, %v264
  %v268 = vmul.f32 %v267, %v169
  %v269 = vtanh.pop %v268
  %v270 = vmul.f32 %v269, %v169
  %v271 = vadd.f32 %v270, %v170
  %273 = vrot.lane.b32.xlu0 %v179, 32
  %v274 = vpop.permute.xlu0 %273
  %v276 = vmul.f32 %v271, %v274
  %278 = vrot.lane.b32.xlu0 %v271, 32
  %v279 = vpop.permute.xlu0 %278
  %v281 = vmul.f32 %v271, %v279
  %283 = vrot.lane.b32.xlu0 %v281, 32
  %v284 = vpop.permute.xlu0 %283
  %v286 = vadd.f32 %v276, %v284
  %v287 = vtanh.pop %v286
  %289 = vrot.lane.b32.xlu0 %v287, 32
  %v290 = vpop.permute.xlu0 %289
  %v292 = vmul.f32 %v271, %v290
  %294 = vrot.lane.b32.xlu0 %v292, 64
  %v295 = vpop.permute.xlu0 %294
  %297 = vst.msk [vmem:[#allocation2 + $0x8] sm:$0xff] %vm190, %v295
  %298 = vst.msk [vmem:[#allocation2 + $0x30] sm:$0xff] %vm192, %v295
  %v299 = vsel %vm194, %v295, 0
  %301 = vmatprep.subr.mxu0 0.0
  %302 = vmatpush1.msra.mxu0 %v162
  %303 = vmatprep.subr.mxu0 0.0
  %304 = vmatpush1.msra.mxu0 %v163
  %305 = vmatprep.subr.mxu0 0.0
  %306 = vmatpush1.msra.mxu0 %v164
  %307 = vmatprep.subr.mxu0 0.0
  %308 = vmatpush1.msra.mxu0 %v165
  %309 = vmatprep.subr.mxu0 0.0
  %310 = vmatpush1.msra.mxu0 0.0
  %311 = vmatprep.subr.mxu0 0.0
  %312 = vmatpush1.msra.mxu0 0.0
  %313 = vmatprep.subr.mxu0 0.0
  %314 = vmatpush1.msra.mxu0 0.0
  %315 = vmatprep.subr.mxu0 0.0
  %316 = vmatpush1.msra.mxu0 0.0
  %317 = vmatprep.subr.mxu0 0.0
  %318 = vmatpush1.msra.mxu0 0.0
  %319 = vmatprep.subr.mxu0 0.0
  %320 = vmatpush1.msra.mxu0 0.0
  %321 = vmatprep.subr.mxu0 0.0
  %322 = vmatpush1.msra.mxu0 0.0
  %323 = vmatprep.subr.mxu0 0.0
  %324 = vmatpush1.msra.mxu0 0.0
  %325 = vmatprep.subr.mxu0 0.0
  %326 = vmatpush1.msra.mxu0 0.0
  %327 = vmatprep.subr.mxu0 0.0
  %328 = vmatpush1.msra.mxu0 0.0
  %329 = vmatprep.subr.mxu0 0.0
  %330 = vmatpush1.msra.mxu0 0.0
  %331 = vmatprep.subr.mxu0 0.0
  %332 = vmatpush1.msra.mxu0 0.0
  %333 = vmatprep.subr.mxu0 0.0
  %334 = vmatpush1.msra.mxu0 0.0
  %335 = vmatprep.subr.mxu0 0.0
  %336 = vmatpush1.msra.mxu0 0.0
  %337 = vmatprep.subr.mxu0 0.0
  %338 = vmatpush1.msra.mxu0 0.0
  %339 = vmatprep.subr.mxu0 0.0
  %340 = vmatpush1.msra.mxu0 0.0
  %341 = vmatprep.subr.mxu0 0.0
  %342 = vmatpush1.msra.mxu0 0.0
  %343 = vmatprep.subr.mxu0 0.0
  %344 = vmatpush1.msra.mxu0 0.0
  %345 = vmatprep.subr.mxu0 0.0
  %346 = vmatpush1.msra.mxu0 0.0
  %347 = vmatprep.subr.mxu0 0.0
  %348 = vmatpush1.msra.mxu0 0.0
  %349 = vmatprep.subr.mxu0 0.0
  %350 = vmatpush1.msra.mxu0 0.0
  %351 = vmatprep.subr.mxu0 0.0
  %352 = vmatpush1.msra.mxu0 0.0
  %353 = vmatprep.subr.mxu0 0.0
  %354 = vmatpush1.msra.mxu0 0.0
  %355 = vmatprep.subr.mxu0 0.0
  %356 = vmatpush1.msra.mxu0 0.0
  %357 = vmatprep.subr.mxu0 0.0
  %358 = vmatpush1.msra.mxu0 0.0
  %359 = vmatprep.subr.mxu0 0.0
  %360 = vmatpush1.msra.mxu0 0.0
  %361 = vmatprep.subr.mxu0 0.0
  %362 = vmatpush1.msra.mxu0 0.0
  %363 = vmatprep.subr.mxu0 0.0
  %364 = vmatpush1.msra.mxu0 0.0
  %365 = vmatprep.mubr.f32.mxu0 0.0
  %366 = vmatmul.mubr.f32.gmra.mrb[0].mxu0 %v299
  %v367 = vpop.f32.mrb[0].mxu0
  %v368 = vadd.f32 0.0, %v367
  %v369 = vpop.f32.mrb[0].mxu0
  %370 = vdwg.mxu0
  %v371 = vadd.f32 %v134, %v368
  %v372 = vmul.f32 %v371, %v169
  %v373 = vtanh.pop %v372
  %v374 = vmul.f32 %v373, %v169
  %v375 = vadd.f32 %v374, %v170
  %v376 = vmul.f32 %v375, %v286
  %378 = vrot.lane.b32.xlu0 %v375, 32
  %v379 = vpop.permute.xlu0 %378
  %v381 = vmul.f32 %v375, %v379
  %383 = vrot.lane.b32.xlu0 %v381, 32
  %v384 = vpop.permute.xlu0 %383
  %v386 = vadd.f32 %v376, %v384
  %v387 = vtanh.pop %v386
  %389 = vrot.lane.b32.xlu0 %v387, 32
  %v390 = vpop.permute.xlu0 %389
  %v392 = vmul.f32 %v375, %v390
  %394 = vrot.lane.b32.xlu0 %v392, 64
  %v395 = vpop.permute.xlu0 %394
  %397 = vst.msk [vmem:[#allocation2 + $0x10] sm:$0xff] %vm190, %v395
  %398 = vst.msk [vmem:[#allocation2 + $0x28] sm:$0xff] %vm192, %v395
  %v399 = vsel %vm194, %v395, 0
  %401 = vmatprep.subr.mxu0 0.0
  %402 = vmatpush1.msra.mxu0 %v162
  %403 = vmatprep.subr.mxu0 0.0
  %404 = vmatpush1.msra.mxu0 %v163
  %405 = vmatprep.subr.mxu0 0.0
  %406 = vmatpush1.msra.mxu0 %v164
  %407 = vmatprep.subr.mxu0 0.0
  %408 = vmatpush1.msra.mxu0 %v165
  %409 = vmatprep.subr.mxu0 0.0
  %410 = vmatpush1.msra.mxu0 0.0
  %411 = vmatprep.subr.mxu0 0.0
  %412 = vmatpush1.msra.mxu0 0.0
  %413 = vmatprep.subr.mxu0 0.0
  %414 = vmatpush1.msra.mxu0 0.0
  %415 = vmatprep.subr.mxu0 0.0
  %416 = vmatpush1.msra.mxu0 0.0
  %417 = vmatprep.subr.mxu0 0.0
  %418 = vmatpush1.msra.mxu0 0.0
  %419 = vmatprep.subr.mxu0 0.0
  %420 = vmatpush1.msra.mxu0 0.0
  %421 = vmatprep.subr.mxu0 0.0
  %422 = vmatpush1.msra.mxu0 0.0
  %423 = vmatprep.subr.mxu0 0.0
  %424 = vmatpush1.msra.mxu0 0.0
  %425 = vmatprep.subr.mxu0 0.0
  %426 = vmatpush1.msra.mxu0 0.0
  %427 = vmatprep.subr.mxu0 0.0
  %428 = vmatpush1.msra.mxu0 0.0
  %429 = vmatprep.subr.mxu0 0.0
  %430 = vmatpush1.msra.mxu0 0.0
  %431 = vmatprep.subr.mxu0 0.0
  %432 = vmatpush1.msra.mxu0 0.0
  %433 = vmatprep.subr.mxu0 0.0
  %434 = vmatpush1.msra.mxu0 0.0
  %435 = vmatprep.subr.mxu0 0.0
  %436 = vmatpush1.msra.mxu0 0.0
  %437 = vmatprep.subr.mxu0 0.0
  %438 = vmatpush1.msra.mxu0 0.0
  %439 = vmatprep.subr.mxu0 0.0
  %440 = vmatpush1.msra.mxu0 0.0
  %441 = vmatprep.subr.mxu0 0.0
  %442 = vmatpush1.msra.mxu0 0.0
  %443 = vmatprep.subr.mxu0 0.0
  %444 = vmatpush1.msra.mxu0 0.0
  %445 = vmatprep.subr.mxu0 0.0
  %446 = vmatpush1.msra.mxu0 0.0
  %447 = vmatprep.subr.mxu0 0.0
  %448 = vmatpush1.msra.mxu0 0.0
  %449 = vmatprep.subr.mxu0 0.0
  %450 = vmatpush1.msra.mxu0 0.0
  %451 = vmatprep.subr.mxu0 0.0
  %452 = vmatpush1.msra.mxu0 0.0
  %453 = vmatprep.subr.mxu0 0.0
  %454 = vmatpush1.msra.mxu0 0.0
  %455 = vmatprep.subr.mxu0 0.0
  %456 = vmatpush1.msra.mxu0 0.0
  %457 = vmatprep.subr.mxu0 0.0
  %458 = vmatpush1.msra.mxu0 0.0
  %459 = vmatprep.subr.mxu0 0.0
  %460 = vmatpush1.msra.mxu0 0.0
  %461 = vmatprep.subr.mxu0 0.0
  %462 = vmatpush1.msra.mxu0 0.0
  %463 = vmatprep.subr.mxu0 0.0
  %464 = vmatpush1.msra.mxu0 0.0
  %465 = vmatprep.mubr.f32.mxu0 0.0
  %466 = vmatmul.mubr.f32.gmra.mrb[0].mxu0 %v399
  %v467 = vpop.f32.mrb[0].mxu0
  %v468 = vadd.f32 0.0, %v467
  %v469 = vpop.f32.mrb[0].mxu0
  %470 = vdwg.mxu0
  %v471 = vadd.f32 %v139, %v468
  %v472 = vmul.f32 %v471, %v169
  %v473 = vtanh.pop %v472
  %v474 = vmul.f32 %v473, %v169
  %v475 = vadd.f32 %v474, %v170
  %v476 = vmul.f32 %v475, %v386
  %478 = vrot.lane.b32.xlu0 %v475, 32
  %v479 = vpop.permute.xlu0 %478
  %v481 = vmul.f32 %v475, %v479
  %483 = vrot.lane.b32.xlu0 %v481, 32
  %v484 = vpop.permute.xlu0 %483
  %v486 = vadd.f32 %v476, %v484
  %v487 = vtanh.pop %v486
  %489 = vrot.lane.b32.xlu0 %v487, 32
  %v490 = vpop.permute.xlu0 %489
  %v492 = vmul.f32 %v475, %v490
  %494 = vrot.lane.b32.xlu0 %v492, 64
  %v495 = vpop.permute.xlu0 %494
  %497 = vst.msk [vmem:[#allocation2 + $0x18] sm:$0xff] %vm190, %v495
  %498 = vst.msk [vmem:[#allocation2 + $0x20] sm:$0xff] %vm192, %v495
  %v499 = vsel %vm194, %v495, 0
  %501 = vmatprep.subr.mxu0 0.0
  %502 = vmatpush1.msra.mxu0 %v162
  %503 = vmatprep.subr.mxu0 0.0
  %504 = vmatpush1.msra.mxu0 %v163
  %505 = vmatprep.subr.mxu0 0.0
  %506 = vmatpush1.msra.mxu0 %v164
  %507 = vmatprep.subr.mxu0 0.0
  %508 = vmatpush1.msra.mxu0 %v165
  %509 = vmatprep.subr.mxu0 0.0
  %510 = vmatpush1.msra.mxu0 0.0
  %511 = vmatprep.subr.mxu0 0.0
  %512 = vmatpush1.msra.mxu0 0.0
  %513 = vmatprep.subr.mxu0 0.0
  %514 = vmatpush1.msra.mxu0 0.0
  %515 = vmatprep.subr.mxu0 0.0
  %516 = vmatpush1.msra.mxu0 0.0
  %517 = vmatprep.subr.mxu0 0.0
  %518 = vmatpush1.msra.mxu0 0.0
  %519 = vmatprep.subr.mxu0 0.0
  %520 = vmatpush1.msra.mxu0 0.0
  %521 = vmatprep.subr.mxu0 0.0
  %522 = vmatpush1.msra.mxu0 0.0
  %523 = vmatprep.subr.mxu0 0.0
  %524 = vmatpush1.msra.mxu0 0.0
  %525 = vmatprep.subr.mxu0 0.0
  %526 = vmatpush1.msra.mxu0 0.0
  %527 = vmatprep.subr.mxu0 0.0
  %528 = vmatpush1.msra.mxu0 0.0
  %529 = vmatprep.subr.mxu0 0.0
  %530 = vmatpush1.msra.mxu0 0.0
  %531 = vmatprep.subr.mxu0 0.0
  %532 = vmatpush1.msra.mxu0 0.0
  %533 = vmatprep.subr.mxu0 0.0
  %534 = vmatpush1.msra.mxu0 0.0
  %535 = vmatprep.subr.mxu0 0.0
  %536 = vmatpush1.msra.mxu0 0.0
  %537 = vmatprep.subr.mxu0 0.0
  %538 = vmatpush1.msra.mxu0 0.0
  %539 = vmatprep.subr.mxu0 0.0
  %540 = vmatpush1.msra.mxu0 0.0
  %541 = vmatprep.subr.mxu0 0.0
  %542 = vmatpush1.msra.mxu0 0.0
  %543 = vmatprep.subr.mxu0 0.0
  %544 = vmatpush1.msra.mxu0 0.0
  %545 = vmatprep.subr.mxu0 0.0
  %546 = vmatpush1.msra.mxu0 0.0
  %547 = vmatprep.subr.mxu0 0.0
  %548 = vmatpush1.msra.mxu0 0.0
  %549 = vmatprep.subr.mxu0 0.0
  %550 = vmatpush1.msra.mxu0 0.0
  %551 = vmatprep.subr.mxu0 0.0
  %552 = vmatpush1.msra.mxu0 0.0
  %553 = vmatprep.subr.mxu0 0.0
  %554 = vmatpush1.msra.mxu0 0.0
  %555 = vmatprep.subr.mxu0 0.0
  %556 = vmatpush1.msra.mxu0 0.0
  %557 = vmatprep.subr.mxu0 0.0
  %558 = vmatpush1.msra.mxu0 0.0
  %559 = vmatprep.subr.mxu0 0.0
  %560 = vmatpush1.msra.mxu0 0.0
  %561 = vmatprep.subr.mxu0 0.0
  %562 = vmatpush1.msra.mxu0 0.0
  %563 = vmatprep.subr.mxu0 0.0
  %564 = vmatpush1.msra.mxu0 0.0
  %565 = vmatprep.mubr.f32.mxu0 0.0
  %566 = vmatmul.mubr.f32.gmra.mrb[0].mxu0 %v499
  %v567 = vpop.f32.mrb[0].mxu0
  %v568 = vadd.f32 0.0, %v567
  %v569 = vpop.f32.mrb[0].mxu0
  %570 = vdwg.mxu0
  %v571 = vadd.f32 %v144, %v568
  %v572 = vmul.f32 %v571, %v169
  %v573 = vtanh.pop %v572
  %v574 = vmul.f32 %v573, %v169
  %v575 = vadd.f32 %v574, %v170
  %v576 = vmul.f32 %v575, %v486
  %578 = vrot.lane.b32.xlu0 %v575, 32
  %v579 = vpop.permute.xlu0 %578
  %v581 = vmul.f32 %v575, %v579
  %583 = vrot.lane.b32.xlu0 %v581, 32
  %v584 = vpop.permute.xlu0 %583
  %v586 = vadd.f32 %v576, %v584
  %v587 = vtanh.pop %v586
  %589 = vrot.lane.b32.xlu0 %v587, 32
  %v590 = vpop.permute.xlu0 %589
  %v592 = vmul.f32 %v575, %v590
  %594 = vrot.lane.b32.xlu0 %v592, 64
  %v595 = vpop.permute.xlu0 %594
  %597 = vst.msk [vmem:[#allocation2 + $0x20] sm:$0xff] %vm190, %v595
  %598 = vst.msk [vmem:[#allocation2 + $0x18] sm:$0xff] %vm192, %v595
  %v599 = vsel %vm194, %v595, 0
  %601 = vmatprep.subr.mxu0 0.0
  %602 = vmatpush1.msra.mxu0 %v162
  %603 = vmatprep.subr.mxu0 0.0
  %604 = vmatpush1.msra.mxu0 %v163
  %605 = vmatprep.subr.mxu0 0.0
  %606 = vmatpush1.msra.mxu0 %v164
  %607 = vmatprep.subr.mxu0 0.0
  %608 = vmatpush1.msra.mxu0 %v165
  %609 = vmatprep.subr.mxu0 0.0
  %610 = vmatpush1.msra.mxu0 0.0
  %611 = vmatprep.subr.mxu0 0.0
  %612 = vmatpush1.msra.mxu0 0.0
  %613 = vmatprep.subr.mxu0 0.0
  %614 = vmatpush1.msra.mxu0 0.0
  %615 = vmatprep.subr.mxu0 0.0
  %616 = vmatpush1.msra.mxu0 0.0
  %617 = vmatprep.subr.mxu0 0.0
  %618 = vmatpush1.msra.mxu0 0.0
  %619 = vmatprep.subr.mxu0 0.0
  %620 = vmatpush1.msra.mxu0 0.0
  %621 = vmatprep.subr.mxu0 0.0
  %622 = vmatpush1.msra.mxu0 0.0
  %623 = vmatprep.subr.mxu0 0.0
  %624 = vmatpush1.msra.mxu0 0.0
  %625 = vmatprep.subr.mxu0 0.0
  %626 = vmatpush1.msra.mxu0 0.0
  %627 = vmatprep.subr.mxu0 0.0
  %628 = vmatpush1.msra.mxu0 0.0
  %629 = vmatprep.subr.mxu0 0.0
  %630 = vmatpush1.msra.mxu0 0.0
  %631 = vmatprep.subr.mxu0 0.0
  %632 = vmatpush1.msra.mxu0 0.0
  %633 = vmatprep.subr.mxu0 0.0
  %634 = vmatpush1.msra.mxu0 0.0
  %635 = vmatprep.subr.mxu0 0.0
  %636 = vmatpush1.msra.mxu0 0.0
  %637 = vmatprep.subr.mxu0 0.0
  %638 = vmatpush1.msra.mxu0 0.0
  %639 = vmatprep.subr.mxu0 0.0
  %640 = vmatpush1.msra.mxu0 0.0
  %641 = vmatprep.subr.mxu0 0.0
  %642 = vmatpush1.msra.mxu0 0.0
  %643 = vmatprep.subr.mxu0 0.0
  %644 = vmatpush1.msra.mxu0 0.0
  %645 = vmatprep.subr.mxu0 0.0
  %646 = vmatpush1.msra.mxu0 0.0
  %647 = vmatprep.subr.mxu0 0.0
  %648 = vmatpush1.msra.mxu0 0.0
  %649 = vmatprep.subr.mxu0 0.0
  %650 = vmatpush1.msra.mxu0 0.0
  %651 = vmatprep.subr.mxu0 0.0
  %652 = vmatpush1.msra.mxu0 0.0
  %653 = vmatprep.subr.mxu0 0.0
  %654 = vmatpush1.msra.mxu0 0.0
  %655 = vmatprep.subr.mxu0 0.0
  %656 = vmatpush1.msra.mxu0 0.0
  %657 = vmatprep.subr.mxu0 0.0
  %658 = vmatpush1.msra.mxu0 0.0
  %659 = vmatprep.subr.mxu0 0.0
  %660 = vmatpush1.msra.mxu0 0.0
  %661 = vmatprep.subr.mxu0 0.0
  %662 = vmatpush1.msra.mxu0 0.0
  %663 = vmatprep.subr.mxu0 0.0
  %664 = vmatpush1.msra.mxu0 0.0
  %665 = vmatprep.mubr.f32.mxu0 0.0
  %666 = vmatmul.mubr.f32.gmra.mrb[0].mxu0 %v599
  %v667 = vpop.f32.mrb[0].mxu0
  %v668 = vadd.f32 0.0, %v667
  %v669 = vpop.f32.mrb[0].mxu0
  %670 = vdwg.mxu0
  %v671 = vadd.f32 %v149, %v668
  %v672 = vmul.f32 %v671, %v169
  %v673 = vtanh.pop %v672
  %v674 = vmul.f32 %v673, %v169
  %v675 = vadd.f32 %v674, %v170
  %v676 = vmul.f32 %v675, %v586
  %678 = vrot.lane.b32.xlu0 %v675, 32
  %v679 = vpop.permute.xlu0 %678
  %v681 = vmul.f32 %v675, %v679
  %683 = vrot.lane.b32.xlu0 %v681, 32
  %v684 = vpop.permute.xlu0 %683
  %v686 = vadd.f32 %v676, %v684
  %v687 = vtanh.pop %v686
  %689 = vrot.lane.b32.xlu0 %v687, 32
  %v690 = vpop.permute.xlu0 %689
  %v692 = vmul.f32 %v675, %v690
  %694 = vrot.lane.b32.xlu0 %v692, 64
  %v695 = vpop.permute.xlu0 %694
  %697 = vst.msk [vmem:[#allocation2 + $0x28] sm:$0xff] %vm190, %v695
  %698 = vst.msk [vmem:[#allocation2 + $0x10] sm:$0xff] %vm192, %v695
  %v699 = vsel %vm194, %v695, 0
  %701 = vmatprep.subr.mxu0 0.0
  %702 = vmatpush1.msra.mxu0 %v162
  %703 = vmatprep.subr.mxu0 0.0
  %704 = vmatpush1.msra.mxu0 %v163
  %705 = vmatprep.subr.mxu0 0.0
  %706 = vmatpush1.msra.mxu0 %v164
  %707 = vmatprep.subr.mxu0 0.0
  %708 = vmatpush1.msra.mxu0 %v165
  %709 = vmatprep.subr.mxu0 0.0
  %710 = vmatpush1.msra.mxu0 0.0
  %711 = vmatprep.subr.mxu0 0.0
  %712 = vmatpush1.msra.mxu0 0.0
  %713 = vmatprep.subr.mxu0 0.0
  %714 = vmatpush1.msra.mxu0 0.0
  %715 = vmatprep.subr.mxu0 0.0
  %716 = vmatpush1.msra.mxu0 0.0
  %717 = vmatprep.subr.mxu0 0.0
  %718 = vmatpush1.msra.mxu0 0.0
  %719 = vmatprep.subr.mxu0 0.0
  %720 = vmatpush1.msra.mxu0 0.0
  %721 = vmatprep.subr.mxu0 0.0
  %722 = vmatpush1.msra.mxu0 0.0
  %723 = vmatprep.subr.mxu0 0.0
  %724 = vmatpush1.msra.mxu0 0.0
  %725 = vmatprep.subr.mxu0 0.0
  %726 = vmatpush1.msra.mxu0 0.0
  %727 = vmatprep.subr.mxu0 0.0
  %728 = vmatpush1.msra.mxu0 0.0
  %729 = vmatprep.subr.mxu0 0.0
  %730 = vmatpush1.msra.mxu0 0.0
  %731 = vmatprep.subr.mxu0 0.0
  %732 = vmatpush1.msra.mxu0 0.0
  %733 = vmatprep.subr.mxu0 0.0
  %734 = vmatpush1.msra.mxu0 0.0
  %735 = vmatprep.subr.mxu0 0.0
  %736 = vmatpush1.msra.mxu0 0.0
  %737 = vmatprep.subr.mxu0 0.0
  %738 = vmatpush1.msra.mxu0 0.0
  %739 = vmatprep.subr.mxu0 0.0
  %740 = vmatpush1.msra.mxu0 0.0
  %741 = vmatprep.subr.mxu0 0.0
  %742 = vmatpush1.msra.mxu0 0.0
  %743 = vmatprep.subr.mxu0 0.0
  %744 = vmatpush1.msra.mxu0 0.0
  %745 = vmatprep.subr.mxu0 0.0
  %746 = vmatpush1.msra.mxu0 0.0
  %747 = vmatprep.subr.mxu0 0.0
  %748 = vmatpush1.msra.mxu0 0.0
  %749 = vmatprep.subr.mxu0 0.0
  %750 = vmatpush1.msra.mxu0 0.0
  %751 = vmatprep.subr.mxu0 0.0
  %752 = vmatpush1.msra.mxu0 0.0
  %753 = vmatprep.subr.mxu0 0.0
  %754 = vmatpush1.msra.mxu0 0.0
  %755 = vmatprep.subr.mxu0 0.0
  %756 = vmatpush1.msra.mxu0 0.0
  %757 = vmatprep.subr.mxu0 0.0
  %758 = vmatpush1.msra.mxu0 0.0
  %759 = vmatprep.subr.mxu0 0.0
  %760 = vmatpush1.msra.mxu0 0.0
  %761 = vmatprep.subr.mxu0 0.0
  %762 = vmatpush1.msra.mxu0 0.0
  %763 = vmatprep.subr.mxu0 0.0
  %764 = vmatpush1.msra.mxu0 0.0
  %765 = vmatprep.mubr.f32.mxu0 0.0
  %766 = vmatmul.mubr.f32.gmra.mrb[0].mxu0 %v699
  %v767 = vpop.f32.mrb[0].mxu0
  %v768 = vadd.f32 0.0, %v767
  %v769 = vpop.f32.mrb[0].mxu0
  %770 = vdwg.mxu0
  %v771 = vadd.f32 %v154, %v768
  %v772 = vmul.f32 %v771, %v169
  %v773 = vtanh.pop %v772
  %v774 = vmul.f32 %v773, %v169
  %v775 = vadd.f32 %v774, %v170
  %v776 = vmul.f32 %v775, %v686
  %778 = vrot.lane.b32.xlu0 %v775, 32
  %v779 = vpop.permute.xlu0 %778
  %v781 = vmul.f32 %v775, %v779
  %783 = vrot.lane.b32.xlu0 %v781, 32
  %v784 = vpop.permute.xlu0 %783
  %v786 = vadd.f32 %v776, %v784
  %v787 = vtanh.pop %v786
  %789 = vrot.lane.b32.xlu0 %v787, 32
  %v790 = vpop.permute.xlu0 %789
  %v792 = vmul.f32 %v775, %v790
  %794 = vrot.lane.b32.xlu0 %v792, 64
  %v795 = vpop.permute.xlu0 %794
  %797 = vst.msk [vmem:[#allocation2 + $0x30] sm:$0xff] %vm190, %v795
  %798 = vst.msk [vmem:[#allocation2 + $0x8] sm:$0xff] %vm192, %v795
  %v799 = vsel %vm194, %v795, 0
  %801 = vmatprep.subr.mxu0 0.0
  %802 = vmatpush1.msra.mxu0 %v162
  %803 = vmatprep.subr.mxu0 0.0
  %804 = vmatpush1.msra.mxu0 %v163
  %805 = vmatprep.subr.mxu0 0.0
  %806 = vmatpush1.msra.mxu0 %v164
  %807 = vmatprep.subr.mxu0 0.0
  %808 = vmatpush1.msra.mxu0 %v165
  %809 = vmatprep.subr.mxu0 0.0
  %810 = vmatpush1.msra.mxu0 0.0
  %811 = vmatprep.subr.mxu0 0.0
  %812 = vmatpush1.msra.mxu0 0.0
  %813 = vmatprep.subr.mxu0 0.0
  %814 = vmatpush1.msra.mxu0 0.0
  %815 = vmatprep.subr.mxu0 0.0
  %816 = vmatpush1.msra.mxu0 0.0
  %817 = vmatprep.subr.mxu0 0.0
  %818 = vmatpush1.msra.mxu0 0.0
  %819 = vmatprep.subr.mxu0 0.0
  %820 = vmatpush1.msra.mxu0 0.0
  %821 = vmatprep.subr.mxu0 0.0
  %822 = vmatpush1.msra.mxu0 0.0
  %823 = vmatprep.subr.mxu0 0.0
  %824 = vmatpush1.msra.mxu0 0.0
  %825 = vmatprep.subr.mxu0 0.0
  %826 = vmatpush1.msra.mxu0 0.0
  %827 = vmatprep.subr.mxu0 0.0
  %828 = vmatpush1.msra.mxu0 0.0
  %829 = vmatprep.subr.mxu0 0.0
  %830 = vmatpush1.msra.mxu0 0.0
  %831 = vmatprep.subr.mxu0 0.0
  %832 = vmatpush1.msra.mxu0 0.0
  %833 = vmatprep.subr.mxu0 0.0
  %834 = vmatpush1.msra.mxu0 0.0
  %835 = vmatprep.subr.mxu0 0.0
  %836 = vmatpush1.msra.mxu0 0.0
  %837 = vmatprep.subr.mxu0 0.0
  %838 = vmatpush1.msra.mxu0 0.0
  %839 = vmatprep.subr.mxu0 0.0
  %840 = vmatpush1.msra.mxu0 0.0
  %841 = vmatprep.subr.mxu0 0.0
  %842 = vmatpush1.msra.mxu0 0.0
  %843 = vmatprep.subr.mxu0 0.0
  %844 = vmatpush1.msra.mxu0 0.0
  %845 = vmatprep.subr.mxu0 0.0
  %846 = vmatpush1.msra.mxu0 0.0
  %847 = vmatprep.subr.mxu0 0.0
  %848 = vmatpush1.msra.mxu0 0.0
  %849 = vmatprep.subr.mxu0 0.0
  %850 = vmatpush1.msra.mxu0 0.0
  %851 = vmatprep.subr.mxu0 0.0
  %852 = vmatpush1.msra.mxu0 0.0
  %853 = vmatprep.subr.mxu0 0.0
  %854 = vmatpush1.msra.mxu0 0.0
  %855 = vmatprep.subr.mxu0 0.0
  %856 = vmatpush1.msra.mxu0 0.0
  %857 = vmatprep.subr.mxu0 0.0
  %858 = vmatpush1.msra.mxu0 0.0
  %859 = vmatprep.subr.mxu0 0.0
  %860 = vmatpush1.msra.mxu0 0.0
  %861 = vmatprep.subr.mxu0 0.0
  %862 = vmatpush1.msra.mxu0 0.0
  %863 = vmatprep.subr.mxu0 0.0
  %864 = vmatpush1.msra.mxu0 0.0
  %865 = vmatprep.mubr.f32.mxu0 0.0
  %866 = vmatmul.mubr.f32.gmra.mrb[0].mxu0 %v799
  %v867 = vpop.f32.mrb[0].mxu0
  %v868 = vadd.f32 0.0, %v867
  %v869 = vpop.f32.mrb[0].mxu0
  %870 = vdwg.mxu0
  %v871 = vadd.f32 %v159, %v868
  %v872 = vmul.f32 %v871, %v169
  %v873 = vtanh.pop %v872
  %v874 = vmul.f32 %v873, %v169
  %v875 = vadd.f32 %v874, %v170
  %v876 = vmul.f32 %v875, %v786
  %878 = vrot.lane.b32.xlu0 %v875, 32
  %v879 = vpop.permute.xlu0 %878
  %v881 = vmul.f32 %v875, %v879
  %883 = vrot.lane.b32.xlu0 %v881, 32
  %v884 = vpop.permute.xlu0 %883
  %v886 = vadd.f32 %v876, %v884
  %v887 = vtanh.pop %v886
  %889 = vrot.lane.b32.xlu0 %v887, 32
  %v890 = vpop.permute.xlu0 %889
  %v892 = vmul.f32 %v875, %v890
  %894 = vrot.lane.b32.xlu0 %v892, 64
  %v895 = vpop.permute.xlu0 %894
  %897 = vst.msk [vmem:[#allocation2 + $0x38] sm:$0xff] %vm190, %v895
  %898 = vst.msk [vmem:[#allocation2] sm:$0xff] %vm192, %v895
  %v899 = vld [vmem:[#allocation2] sm:$0xff]
  %v900 = vld [vmem:[#allocation2 + $0x8] sm:$0xff]
  %v901 = vld [vmem:[#allocation2 + $0x10] sm:$0xff]
  %v902 = vld [vmem:[#allocation2 + $0x18] sm:$0xff]
  %v903 = vld [vmem:[#allocation2 + $0x20] sm:$0xff]
  %v904 = vld [vmem:[#allocation2 + $0x28] sm:$0xff]
  %v905 = vld [vmem:[#allocation2 + $0x30] sm:$0xff]
  %v906 = vld [vmem:[#allocation2 + $0x38] sm:$0xff]
  %v907 = vadd.f32 %v899, %v11
  %v908 = vadd.f32 %v900, %v12
  %v909 = vadd.f32 %v901, %v13
  %v910 = vadd.f32 %v902, %v14
  %v911 = vadd.f32 %v903, %v15
  %v912 = vadd.f32 %v904, %v16
  %v913 = vadd.f32 %v905, %v17
  %v914 = vadd.f32 %v906, %v18
  %v915 = vld [vmem:[%s1 + $0x68] sm:$0xff]
  %v916 = vld [vmem:[%s1 + $0x70] sm:$0xff]
  %v917 = vld [vmem:[%s1 + $0x78] sm:$0xff]
  %v918 = vld [vmem:[%s1 + $0x80] sm:$0xff]
  %v919 = vld [vmem:[%s1 + $0x88] sm:$0x1]
  %v920 = vlaneseq
  %v921 = vshrl.u32 %v920, 7
  %v922 = vsub.s32 0, %v921
  %v923 = vrot.slane %v919, %v922
  %v925 = vsel %vm194, %v907, 0
  %v928 = vsel %vm194, %v908, 0
  %v931 = vsel %vm194, %v909, 0
  %v934 = vsel %vm194, %v910, 0
  %v937 = vsel %vm194, %v911, 0
  %v940 = vsel %vm194, %v912, 0
  %v943 = vsel %vm194, %v913, 0
  %v946 = vsel %vm194, %v914, 0
  %948 = vmatprep.subr.mxu0 0.0
  %949 = vmatpush1.msra.mxu0 %v915
  %950 = vmatprep.subr.mxu0 0.0
  %951 = vmatpush1.msra.mxu0 %v916
  %952 = vmatprep.subr.mxu0 0.0
  %953 = vmatpush1.msra.mxu0 %v917
  %954 = vmatprep.subr.mxu0 0.0
  %955 = vmatpush1.msra.mxu0 %v918
  %956 = vmatprep.subr.mxu0 0.0
  %957 = vmatpush1.msra.mxu0 0.0
  %958 = vmatprep.subr.mxu0 0.0
  %959 = vmatpush1.msra.mxu0 0.0
  %960 = vmatprep.subr.mxu0 0.0
  %961 = vmatpush1.msra.mxu0 0.0
  %962 = vmatprep.subr.mxu0 0.0
  %963 = vmatpush1.msra.mxu0 0.0
  %964 = vmatprep.subr.mxu0 0.0
  %965 = vmatpush1.msra.mxu0 0.0
  %966 = vmatprep.subr.mxu0 0.0
  %967 = vmatpush1.msra.mxu0 0.0
  %968 = vmatprep.subr.mxu0 0.0
  %969 = vmatpush1.msra.mxu0 0.0
  %970 = vmatprep.subr.mxu0 0.0
  %971 = vmatpush1.msra.mxu0 0.0
  %972 = vmatprep.subr.mxu0 0.0
  %973 = vmatpush1.msra.mxu0 0.0
  %974 = vmatprep.subr.mxu0 0.0
  %975 = vmatpush1.msra.mxu0 0.0
  %976 = vmatprep.subr.mxu0 0.0
  %977 = vmatpush1.msra.mxu0 0.0
  %978 = vmatprep.subr.mxu0 0.0
  %979 = vmatpush1.msra.mxu0 0.0
  %980 = vmatprep.subr.mxu0 0.0
  %981 = vmatpush1.msra.mxu0 0.0
  %982 = vmatprep.subr.mxu0 0.0
  %983 = vmatpush1.msra.mxu0 0.0
  %984 = vmatprep.subr.mxu0 0.0
  %985 = vmatpush1.msra.mxu0 0.0
  %986 = vmatprep.subr.mxu0 0.0
  %987 = vmatpush1.msra.mxu0 0.0
  %988 = vmatprep.subr.mxu0 0.0
  %989 = vmatpush1.msra.mxu0 0.0
  %990 = vmatprep.subr.mxu0 0.0
  %991 = vmatpush1.msra.mxu0 0.0
  %992 = vmatprep.subr.mxu0 0.0
  %993 = vmatpush1.msra.mxu0 0.0
  %994 = vmatprep.subr.mxu0 0.0
  %995 = vmatpush1.msra.mxu0 0.0
  %996 = vmatprep.subr.mxu0 0.0
  %997 = vmatpush1.msra.mxu0 0.0
  %998 = vmatprep.subr.mxu0 0.0
  %999 = vmatpush1.msra.mxu0 0.0
  %1000 = vmatprep.subr.mxu0 0.0
  %1001 = vmatpush1.msra.mxu0 0.0
  %1002 = vmatprep.subr.mxu0 0.0
  %1003 = vmatpush1.msra.mxu0 0.0
  %1004 = vmatprep.subr.mxu0 0.0
  %1005 = vmatpush1.msra.mxu0 0.0
  %1006 = vmatprep.subr.mxu0 0.0
  %1007 = vmatpush1.msra.mxu0 0.0
  %1008 = vmatprep.subr.mxu0 0.0
  %1009 = vmatpush1.msra.mxu0 0.0
  %1010 = vmatprep.subr.mxu0 0.0
  %1011 = vmatpush1.msra.mxu0 0.0
  %1012 = vmatprep.mubr.f32.mxu0 0.0
  %1013 = vmatmul.mubr.f32.gmra.mrb[0].mxu0 %v925
  %v1014 = vpop.f32.mrb[0].mxu0
  %v1015 = vadd.f32 %v923, %v1014
  %v1016 = vpop.f32.mrb[0].mxu0
  %1017 = vmatprep.mubr.f32.mxu0 0.0
  %1018 = vmatmul.mubr.f32.gmra.mrb[0].mxu0 %v928
  %v1019 = vpop.f32.mrb[0].mxu0
  %v1020 = vadd.f32 %v923, %v1019
  %v1021 = vpop.f32.mrb[0].mxu0
  %1022 = vmatprep.mubr.f32.mxu0 0.0
  %1023 = vmatmul.mubr.f32.gmra.mrb[0].mxu0 %v931
  %v1024 = vpop.f32.mrb[0].mxu0
  %v1025 = vadd.f32 %v923, %v1024
  %v1026 = vpop.f32.mrb[0].mxu0
  %1027 = vmatprep.mubr.f32.mxu0 0.0
  %1028 = vmatmul.mubr.f32.gmra.mrb[0].mxu0 %v934
  %v1029 = vpop.f32.mrb[0].mxu0
  %v1030 = vadd.f32 %v923, %v1029
  %v1031 = vpop.f32.mrb[0].mxu0
  %1032 = vmatprep.mubr.f32.mxu0 0.0
  %1033 = vmatmul.mubr.f32.gmra.mrb[0].mxu0 %v937
  %v1034 = vpop.f32.mrb[0].mxu0
  %v1035 = vadd.f32 %v923, %v1034
  %v1036 = vpop.f32.mrb[0].mxu0
  %1037 = vmatprep.mubr.f32.mxu0 0.0
  %1038 = vmatmul.mubr.f32.gmra.mrb[0].mxu0 %v940
  %v1039 = vpop.f32.mrb[0].mxu0
  %v1040 = vadd.f32 %v923, %v1039
  %v1041 = vpop.f32.mrb[0].mxu0
  %1042 = vmatprep.mubr.f32.mxu0 0.0
  %1043 = vmatmul.mubr.f32.gmra.mrb[0].mxu0 %v943
  %v1044 = vpop.f32.mrb[0].mxu0
  %v1045 = vadd.f32 %v923, %v1044
  %v1046 = vpop.f32.mrb[0].mxu0
  %1047 = vmatprep.mubr.f32.mxu0 0.0
  %1048 = vmatmul.mubr.f32.gmra.mrb[0].mxu0 %v946
  %v1049 = vpop.f32.mrb[0].mxu0
  %v1050 = vadd.f32 %v923, %v1049
  %v1051 = vpop.f32.mrb[0].mxu0
  %1052 = vdwg.mxu0
  %v1053 = vmax.f32 %v1015, 0.0
  %v1054 = vmax.f32 %v1020, 0.0
  %v1055 = vmax.f32 %v1025, 0.0
  %v1056 = vmax.f32 %v1030, 0.0
  %v1057 = vmax.f32 %v1035, 0.0
  %v1058 = vmax.f32 %v1040, 0.0
  %v1059 = vmax.f32 %v1045, 0.0
  %v1060 = vmax.f32 %v1050, 0.0
  %v1061 = vld [vmem:[%s1 + $0x90] sm:$0xff]
  %v1062 = vld [vmem:[%s1 + $0x98] sm:$0xff]
  %v1063 = vld [vmem:[%s1 + $0xa0] sm:$0xff]
  %v1064 = vld [vmem:[%s1 + $0xa8] sm:$0xff]
  %v1065 = vld [vmem:[%s1 + $0xb0] sm:$0xff]
  %v1066 = vld [vmem:[%s1 + $0xb8] sm:$0xff]
  %v1067 = vld [vmem:[%s1 + $0xc0] sm:$0xff]
  %v1068 = vld [vmem:[%s1 + $0xc8] sm:$0xff]
  %v1069 = vld [vmem:[%s1 + $0xd0] sm:$0xff]
  %v1070 = vld [vmem:[%s1 + $0xd8] sm:$0xff]
  %v1071 = vld [vmem:[%s1 + $0xe0] sm:$0xff]
  %v1072 = vld [vmem:[%s1 + $0xe8] sm:$0xff]
  %v1073 = vld [vmem:[%s1 + $0xf0] sm:$0xff]
  %v1074 = vld [vmem:[%s1 + $0xf8] sm:$0xff]
  %v1075 = vld [vmem:[%s1 + $0x100] sm:$0xff]
  %v1076 = vld [vmem:[%s1 + $0x108] sm:$0xff]
  %v1077 = vld [vmem:[%s1 + $0x110] sm:$0x1]
  %v1078 = vlaneseq
  %v1079 = vshrl.u32 %v1078, 7
  %v1080 = vsub.s32 0, %v1079
  %v1081 = vrot.slane %v1077, %v1080
  %1082 = vmatprep.subr.mxu0 0.0
  %1083 = vmatpush1.msra.mxu0 %v1061
  %1084 = vmatprep.subr.mxu0 0.0
  %1085 = vmatpush1.msra.mxu0 %v1062
  %1086 = vmatprep.subr.mxu0 0.0
  %1087 = vmatpush1.msra.mxu0 %v1063
  %1088 = vmatprep.subr.mxu0 0.0
  %1089 = vmatpush1.msra.mxu0 %v1064
  %1090 = vmatprep.subr.mxu0 0.0
  %1091 = vmatpush1.msra.mxu0 %v1065
  %1092 = vmatprep.subr.mxu0 0.0
  %1093 = vmatpush1.msra.mxu0 %v1066
  %1094 = vmatprep.subr.mxu0 0.0
  %1095 = vmatpush1.msra.mxu0 %v1067
  %1096 = vmatprep.subr.mxu0 0.0
  %1097 = vmatpush1.msra.mxu0 %v1068
  %1098 = vmatprep.subr.mxu0 0.0
  %1099 = vmatpush1.msra.mxu0 %v1069
  %1100 = vmatprep.subr.mxu0 0.0
  %1101 = vmatpush1.msra.mxu0 %v1070
  %1102 = vmatprep.subr.mxu0 0.0
  %1103 = vmatpush1.msra.mxu0 %v1071
  %1104 = vmatprep.subr.mxu0 0.0
  %1105 = vmatpush1.msra.mxu0 %v1072
  %1106 = vmatprep.subr.mxu0 0.0
  %1107 = vmatpush1.msra.mxu0 %v1073
  %1108 = vmatprep.subr.mxu0 0.0
  %1109 = vmatpush1.msra.mxu0 %v1074
  %1110 = vmatprep.subr.mxu0 0.0
  %1111 = vmatpush1.msra.mxu0 %v1075
  %1112 = vmatprep.subr.mxu0 0.0
  %1113 = vmatpush1.msra.mxu0 %v1076
  %1114 = vmatprep.subr.mxu0 0.0
  %1115 = vmatpush1.msra.mxu0 0.0
  %1116 = vmatprep.subr.mxu0 0.0
  %1117 = vmatpush1.msra.mxu0 0.0
  %1118 = vmatprep.subr.mxu0 0.0
  %1119 = vmatpush1.msra.mxu0 0.0
  %1120 = vmatprep.subr.mxu0 0.0
  %1121 = vmatpush1.msra.mxu0 0.0
  %1122 = vmatprep.subr.mxu0 0.0
  %1123 = vmatpush1.msra.mxu0 0.0
  %1124 = vmatprep.subr.mxu0 0.0
  %1125 = vmatpush1.msra.mxu0 0.0
  %1126 = vmatprep.subr.mxu0 0.0
  %1127 = vmatpush1.msra.mxu0 0.0
  %1128 = vmatprep.subr.mxu0 0.0
  %1129 = vmatpush1.msra.mxu0 0.0
  %1130 = vmatprep.subr.mxu0 0.0
  %1131 = vmatpush1.msra.mxu0 0.0
  %1132 = vmatprep.subr.mxu0 0.0
  %1133 = vmatpush1.msra.mxu0 0.0
  %1134 = vmatprep.subr.mxu0 0.0
  %1135 = vmatpush1.msra.mxu0 0.0
  %1136 = vmatprep.subr.mxu0 0.0
  %1137 = vmatpush1.msra.mxu0 0.0
  %1138 = vmatprep.subr.mxu0 0.0
  %1139 = vmatpush1.msra.mxu0 0.0
  %1140 = vmatprep.subr.mxu0 0.0
  %1141 = vmatpush1.msra.mxu0 0.0
  %1142 = vmatprep.subr.mxu0 0.0
  %1143 = vmatpush1.msra.mxu0 0.0
  %1144 = vmatprep.subr.mxu0 0.0
  %1145 = vmatpush1.msra.mxu0 0.0
  %1146 = vmatprep.mubr.f32.mxu0 0.0
  %1147 = vmatmul.mubr.f32.gmra.mrb[0].mxu0 %v1053
  %v1148 = vpop.f32.mrb[0].mxu0
  %v1149 = vadd.f32 %v1081, %v1148
  %v1150 = vpop.f32.mrb[0].mxu0
  %1151 = vmatprep.mubr.f32.mxu0 0.0
  %1152 = vmatmul.mubr.f32.gmra.mrb[0].mxu0 %v1054
  %v1153 = vpop.f32.mrb[0].mxu0
  %v1154 = vadd.f32 %v1081, %v1153
  %v1155 = vpop.f32.mrb[0].mxu0
  %1156 = vmatprep.mubr.f32.mxu0 0.0
  %1157 = vmatmul.mubr.f32.gmra.mrb[0].mxu0 %v1055
  %v1158 = vpop.f32.mrb[0].mxu0
  %v1159 = vadd.f32 %v1081, %v1158
  %v1160 = vpop.f32.mrb[0].mxu0
  %1161 = vmatprep.mubr.f32.mxu0 0.0
  %1162 = vmatmul.mubr.f32.gmra.mrb[0].mxu0 %v1056
  %v1163 = vpop.f32.mrb[0].mxu0
  %v1164 = vadd.f32 %v1081, %v1163
  %v1165 = vpop.f32.mrb[0].mxu0
  %1166 = vmatprep.mubr.f32.mxu0 0.0
  %1167 = vmatmul.mubr.f32.gmra.mrb[0].mxu0 %v1057
  %v1168 = vpop.f32.mrb[0].mxu0
  %v1169 = vadd.f32 %v1081, %v1168
  %v1170 = vpop.f32.mrb[0].mxu0
  %1171 = vmatprep.mubr.f32.mxu0 0.0
  %1172 = vmatmul.mubr.f32.gmra.mrb[0].mxu0 %v1058
  %v1173 = vpop.f32.mrb[0].mxu0
  %v1174 = vadd.f32 %v1081, %v1173
  %v1175 = vpop.f32.mrb[0].mxu0
  %1176 = vmatprep.mubr.f32.mxu0 0.0
  %1177 = vmatmul.mubr.f32.gmra.mrb[0].mxu0 %v1059
  %v1178 = vpop.f32.mrb[0].mxu0
  %v1179 = vadd.f32 %v1081, %v1178
  %v1180 = vpop.f32.mrb[0].mxu0
  %1181 = vmatprep.mubr.f32.mxu0 0.0
  %1182 = vmatmul.mubr.f32.gmra.mrb[0].mxu0 %v1060
  %v1183 = vpop.f32.mrb[0].mxu0
  %v1184 = vadd.f32 %v1081, %v1183
  %v1185 = vpop.f32.mrb[0].mxu0
  %1186 = vdwg.mxu0
  %v1187 = vmax.f32 %v1149, 0.0
  %v1188 = vmax.f32 %v1154, 0.0
  %v1189 = vmax.f32 %v1159, 0.0
  %v1190 = vmax.f32 %v1164, 0.0
  %v1191 = vmax.f32 %v1169, 0.0
  %v1192 = vmax.f32 %v1174, 0.0
  %v1193 = vmax.f32 %v1179, 0.0
  %v1194 = vmax.f32 %v1184, 0.0
  %v1195 = vld [vmem:[%s1 + $0x118] sm:$0xff]
  %v1196 = vld [vmem:[%s1 + $0x120] sm:$0xff]
  %v1197 = vld [vmem:[%s1 + $0x128] sm:$0xff]
  %v1198 = vld [vmem:[%s1 + $0x130] sm:$0xff]
  %v1199 = vld [vmem:[%s1 + $0x138] sm:$0xff]
  %v1200 = vld [vmem:[%s1 + $0x140] sm:$0xff]
  %v1201 = vld [vmem:[%s1 + $0x148] sm:$0xff]
  %v1202 = vld [vmem:[%s1 + $0x150] sm:$0xff]
  %v1203 = vld [vmem:[%s1 + $0x158] sm:$0xff]
  %v1204 = vld [vmem:[%s1 + $0x160] sm:$0xff]
  %v1205 = vld [vmem:[%s1 + $0x168] sm:$0xff]
  %v1206 = vld [vmem:[%s1 + $0x170] sm:$0xff]
  %v1207 = vld [vmem:[%s1 + $0x178] sm:$0xff]
  %v1208 = vld [vmem:[%s1 + $0x180] sm:$0xff]
  %v1209 = vld [vmem:[%s1 + $0x188] sm:$0xff]
  %v1210 = vld [vmem:[%s1 + $0x190] sm:$0xff]
  %v1211 = vld [vmem:[%s1 + $0x198] sm:$0x1]
  %v1212 = vlaneseq
  %v1213 = vshrl.u32 %v1212, 7
  %v1214 = vsub.s32 0, %v1213
  %v1215 = vrot.slane %v1211, %v1214
  %1216 = vmatprep.subr.mxu0 0.0
  %1217 = vmatpush1.msra.mxu0 %v1195
  %1218 = vmatprep.subr.mxu0 0.0
  %1219 = vmatpush1.msra.mxu0 %v1196
  %1220 = vmatprep.subr.mxu0 0.0
  %1221 = vmatpush1.msra.mxu0 %v1197
  %1222 = vmatprep.subr.mxu0 0.0
  %1223 = vmatpush1.msra.mxu0 %v1198
  %1224 = vmatprep.subr.mxu0 0.0
  %1225 = vmatpush1.msra.mxu0 %v1199
  %1226 = vmatprep.subr.mxu0 0.0
  %1227 = vmatpush1.msra.mxu0 %v1200
  %1228 = vmatprep.subr.mxu0 0.0
  %1229 = vmatpush1.msra.mxu0 %v1201
  %1230 = vmatprep.subr.mxu0 0.0
  %1231 = vmatpush1.msra.mxu0 %v1202
  %1232 = vmatprep.subr.mxu0 0.0
  %1233 = vmatpush1.msra.mxu0 %v1203
  %1234 = vmatprep.subr.mxu0 0.0
  %1235 = vmatpush1.msra.mxu0 %v1204
  %1236 = vmatprep.subr.mxu0 0.0
  %1237 = vmatpush1.msra.mxu0 %v1205
  %1238 = vmatprep.subr.mxu0 0.0
  %1239 = vmatpush1.msra.mxu0 %v1206
  %1240 = vmatprep.subr.mxu0 0.0
  %1241 = vmatpush1.msra.mxu0 %v1207
  %1242 = vmatprep.subr.mxu0 0.0
  %1243 = vmatpush1.msra.mxu0 %v1208
  %1244 = vmatprep.subr.mxu0 0.0
  %1245 = vmatpush1.msra.mxu0 %v1209
  %1246 = vmatprep.subr.mxu0 0.0
  %1247 = vmatpush1.msra.mxu0 %v1210
  %1248 = vmatprep.subr.mxu0 0.0
  %1249 = vmatpush1.msra.mxu0 0.0
  %1250 = vmatprep.subr.mxu0 0.0
  %1251 = vmatpush1.msra.mxu0 0.0
  %1252 = vmatprep.subr.mxu0 0.0
  %1253 = vmatpush1.msra.mxu0 0.0
  %1254 = vmatprep.subr.mxu0 0.0
  %1255 = vmatpush1.msra.mxu0 0.0
  %1256 = vmatprep.subr.mxu0 0.0
  %1257 = vmatpush1.msra.mxu0 0.0
  %1258 = vmatprep.subr.mxu0 0.0
  %1259 = vmatpush1.msra.mxu0 0.0
  %1260 = vmatprep.subr.mxu0 0.0
  %1261 = vmatpush1.msra.mxu0 0.0
  %1262 = vmatprep.subr.mxu0 0.0
  %1263 = vmatpush1.msra.mxu0 0.0
  %1264 = vmatprep.subr.mxu0 0.0
  %1265 = vmatpush1.msra.mxu0 0.0
  %1266 = vmatprep.subr.mxu0 0.0
  %1267 = vmatpush1.msra.mxu0 0.0
  %1268 = vmatprep.subr.mxu0 0.0
  %1269 = vmatpush1.msra.mxu0 0.0
  %1270 = vmatprep.subr.mxu0 0.0
  %1271 = vmatpush1.msra.mxu0 0.0
  %1272 = vmatprep.subr.mxu0 0.0
  %1273 = vmatpush1.msra.mxu0 0.0
  %1274 = vmatprep.subr.mxu0 0.0
  %1275 = vmatpush1.msra.mxu0 0.0
  %1276 = vmatprep.subr.mxu0 0.0
  %1277 = vmatpush1.msra.mxu0 0.0
  %1278 = vmatprep.subr.mxu0 0.0
  %1279 = vmatpush1.msra.mxu0 0.0
  %1280 = vmatprep.mubr.f32.mxu0 0.0
  %1281 = vmatmul.mubr.f32.gmra.mrb[0].mxu0 %v1187
  %v1282 = vpop.f32.mrb[0].mxu0
  %v1283 = vadd.f32 %v1215, %v1282
  %v1284 = vpop.f32.mrb[0].mxu0
  %1285 = vmatprep.mubr.f32.mxu0 0.0
  %1286 = vmatmul.mubr.f32.gmra.mrb[0].mxu0 %v1188
  %v1287 = vpop.f32.mrb[0].mxu0
  %v1288 = vadd.f32 %v1215, %v1287
  %v1289 = vpop.f32.mrb[0].mxu0
  %1290 = vmatprep.mubr.f32.mxu0 0.0
  %1291 = vmatmul.mubr.f32.gmra.mrb[0].mxu0 %v1189
  %v1292 = vpop.f32.mrb[0].mxu0
  %v1293 = vadd.f32 %v1215, %v1292
  %v1294 = vpop.f32.mrb[0].mxu0
  %1295 = vmatprep.mubr.f32.mxu0 0.0
  %1296 = vmatmul.mubr.f32.gmra.mrb[0].mxu0 %v1190
  %v1297 = vpop.f32.mrb[0].mxu0
  %v1298 = vadd.f32 %v1215, %v1297
  %v1299 = vpop.f32.mrb[0].mxu0
  %1300 = vmatprep.mubr.f32.mxu0 0.0
  %1301 = vmatmul.mubr.f32.gmra.mrb[0].mxu0 %v1191
  %v1302 = vpop.f32.mrb[0].mxu0
  %v1303 = vadd.f32 %v1215, %v1302
  %v1304 = vpop.f32.mrb[0].mxu0
  %1305 = vmatprep.mubr.f32.mxu0 0.0
  %1306 = vmatmul.mubr.f32.gmra.mrb[0].mxu0 %v1192
  %v1307 = vpop.f32.mrb[0].mxu0
  %v1308 = vadd.f32 %v1215, %v1307
  %v1309 = vpop.f32.mrb[0].mxu0
  %1310 = vmatprep.mubr.f32.mxu0 0.0
  %1311 = vmatmul.mubr.f32.gmra.mrb[0].mxu0 %v1193
  %v1312 = vpop.f32.mrb[0].mxu0
  %v1313 = vadd.f32 %v1215, %v1312
  %v1314 = vpop.f32.mrb[0].mxu0
  %1315 = vmatprep.mubr.f32.mxu0 0.0
  %1316 = vmatmul.mubr.f32.gmra.mrb[0].mxu0 %v1194
  %v1317 = vpop.f32.mrb[0].mxu0
  %v1318 = vadd.f32 %v1215, %v1317
  %v1319 = vpop.f32.mrb[0].mxu0
  %1320 = vdwg.mxu0
  %1321 = vst [vmem:[%s2] sm:$0xff] %v1283
  %1322 = vst [vmem:[%s2 + $0x8] sm:$0xff] %v1288
  %1323 = vst [vmem:[%s2 + $0x10] sm:$0xff] %v1293
  %1324 = vst [vmem:[%s2 + $0x18] sm:$0xff] %v1298
  %1325 = vst [vmem:[%s2 + $0x20] sm:$0xff] %v1303
  %1326 = vst [vmem:[%s2 + $0x28] sm:$0xff] %v1308
  %1327 = vst [vmem:[%s2 + $0x30] sm:$0xff] %v1313
  %1328 = vst [vmem:[%s2 + $0x38] sm:$0xff] %v1318
  // Predicated region
  $region10: #{interffe_forward.1} parent=0 // pred_check
    _
  $region11: #{interffe_forward.1} parent=0 // pred_check_branch
    %1330 = sbr.rel (0) target = $region13
  $region12: #{interffe_forward.1} parent=0 // pred_region
    _
  $region13: #{interffe_forward.1} parent=0 // pred_fallthru
    _
  // Predicated region
  $region14: #{interffe_forward.1} parent=0 // pred_check
    _
  $region15: #{interffe_forward.1} parent=0 // pred_check_branch
    %1332 = sbr.rel (0) target = $region17
  $region16: #{interffe_forward.1} parent=0 // pred_region
    _
  $region17: #{interffe_forward.1} parent=0 // pred_fallthru
    _

</llo_original>
